<compile_context>
chip_gen: v7x
topology: tpu7x:2x2x1
jax: 0.10.0
libtpu: 0.0.40
codegen_flags: <defaults>
</compile_context>

<pallas_src>
import functools
import math

import jax
import jax.numpy as jnp
from jax.experimental import pallas as pl
from jax.experimental.pallas import tpu as pltpu

_NEG = -1e9  # finite additive-mask sentinel (avoids inf - inf -> NaN in softmax)


def _layernorm(x, gamma, beta, eps=1e-5):
    mean = jnp.mean(x, axis=-1, keepdims=True)
    var = jnp.mean((x - mean) ** 2, axis=-1, keepdims=True)
    return (x - mean) * jax.lax.rsqrt(var + eps) * gamma + beta


# ----------------------------- kernel ---------------------------------------


def _rab_kernel(
    x_ref,       # (Nb, Lp, E)  f32   batch block
    kp_ref,      # (Nb, 1, Lp)  f32   additive key bias (0 or -1e9)
    ln1_g_ref,   # (1, E) f32
    ln1_b_ref,   # (1, E) f32
    wqkv_ref,    # (E, 3E)      bf16  in_proj_weight.T (Q columns pre-scaled)
    bqkv_ref,    # (1, 3E)      f32   in_proj_bias (Q part pre-scaled)
    wout_ref,    # (H, hd, E)   bf16  out_proj.weight.T split per head
    bout_ref,    # (1, E)       f32
    ln2_g_ref,   # (1, E) f32
    ln2_b_ref,   # (1, E) f32
    wfc_ref,     # (E, 4E)      bf16  c_fc.weight.T
    bfc_ref,     # (1, 4E)      f32
    wproj_ref,   # (4E, E)      bf16  c_proj.weight.T
    bproj_ref,   # (1, E)       f32
    o_ref,       # (Nb, Lp, E)  f32
    *,
    n_head: int,
    use_mask: bool,
    mlp_chunks: tuple,
):
    Nb, Lp, E = x_ref.shape
    hd = E // n_head
    M = Nb * Lp
    bf16 = jnp.bfloat16
    f32 = jnp.float32

    x = x_ref[...].astype(f32).reshape(M, E)          # flatten batch rows -> fill MXU M

    # ----- attention branch: x + out_proj(MHA(LN1(x))) -----
    xn = _layernorm(x, ln1_g_ref[...], ln1_b_ref[...])
    qkv = jnp.dot(xn.astype(bf16), wqkv_ref[...],
                  preferred_element_type=f32) + bqkv_ref[...]
    q = qkv[:, :E].astype(bf16).reshape(Nb, Lp, E)     # scale already folded into wqkv
    k = qkv[:, E:2 * E].astype(bf16).reshape(Nb, Lp, E)
    v = qkv[:, 2 * E:].astype(bf16).reshape(Nb, Lp, E)

    if use_mask:
        # hoisted once (JAX does not CSE broadcast_in_dim inside the head loop)
        kp = jnp.broadcast_to(kp_ref[...].astype(f32), (Nb, Lp, Lp))

    attn = jnp.zeros((M, E), f32)
    for h in range(n_head):                            # static; each iter batched over Nb*Lp rows
        sl = slice(h * hd, (h + 1) * hd)
        s = jnp.einsum("bqd,bkd->bqk", q[:, :, sl], k[:, :, sl],
                       preferred_element_type=f32)     # (Nb, Lp, Lp) f32
        if use_mask:
            s = s + kp
        s = s - jnp.max(s, axis=-1, keepdims=True)
        p = jnp.exp(s)
        p = p * pl.reciprocal(jnp.sum(p, axis=-1, keepdims=True), approx=True)
        oh = jnp.einsum("bqk,bkd->bqd", p.astype(bf16), v[:, :, sl],
                        preferred_element_type=f32)    # (Nb, Lp, hd)
        # accumulate the out-projection per head -> no lane-axis concatenate
        attn = attn + jnp.dot(oh.reshape(M, hd).astype(bf16), wout_ref[h],
                              preferred_element_type=f32)
    x = x + attn + bout_ref[...]

    # ----- MLP branch: x + c_proj(QuickGELU(c_fc(LN2(x)))) -----
    xn2 = _layernorm(x, ln2_g_ref[...], ln2_b_ref[...]).astype(bf16)
    h2 = jnp.zeros((M, E), f32)
    for c0, cw in mlp_chunks:                          # static hidden-dim tiling (VMEM control)
        h1 = jnp.dot(xn2, wfc_ref[:, c0:c0 + cw],
                     preferred_element_type=f32) + bfc_ref[:, c0:c0 + cw]
        h1 = h1 * jax.nn.sigmoid(1.702 * h1)           # QuickGELU in f32
        h2 = h2 + jnp.dot(h1.astype(bf16), wproj_ref[c0:c0 + cw, :],
                          preferred_element_type=f32)
    x = x + h2 + bproj_ref[...]

    o_ref[...] = x.reshape(Nb, Lp, E).astype(o_ref.dtype)


# ----------------------------- wrapper ---------------------------------------


def init_params(key, d_model: int, n_head: int):
    ks = jax.random.split(key, 6)
    E = d_model
    return {
        "in_proj_weight": jax.random.normal(ks[0], (3 * E, E), jnp.float32) * 0.02,
        "in_proj_bias": jax.random.normal(ks[1], (3 * E,), jnp.float32) * 0.02,
        "out_proj_weight": jax.random.normal(ks[2], (E, E), jnp.float32) * 0.02,
        "out_proj_bias": jnp.zeros((E,), jnp.float32),
        "ln1_gamma": jnp.ones((E,), jnp.float32),
        "ln1_beta": jnp.zeros((E,), jnp.float32),
        "ln2_gamma": jnp.ones((E,), jnp.float32),
        "ln2_beta": jnp.zeros((E,), jnp.float32),
        "c_fc_weight": jax.random.normal(ks[3], (4 * E, E), jnp.float32) * 0.02,
        "c_fc_bias": jax.random.normal(ks[4], (4 * E,), jnp.float32) * 0.02,
        "c_proj_weight": jax.random.normal(ks[5], (E, 4 * E), jnp.float32) * 0.02,
        "c_proj_bias": jnp.zeros((E,), jnp.float32),
    }


def residual_attention_block(x_lne, params, n_head: int, key_padding_mask=None,
                             batch_block=None, mlp_chunk=2048):
    """x_lne: (L, N, E) float32 (PyTorch module convention).
    key_padding_mask: optional (N, L) bool, True = ignore key position."""
    # TODO(synk): attn_mask (constructor arg) is not supported; module default is None.
    L, N, E = x_lne.shape
    assert E % n_head == 0
    F = 4 * E
    bf16 = jnp.bfloat16

    # pad seq to a sublane multiple, pick Nb so Nb*Lp ~ 256 rows (MXU M fill)
    Lp = ((L + 7) // 8) * 8
    if batch_block is None:
        batch_block = max(1, min(N, pl.cdiv(256, Lp)))
    Nb = batch_block
    Np = pl.cdiv(N, Nb) * Nb

    x = jnp.transpose(x_lne, (1, 0, 2))                     # (N, L, E)
    x = jnp.pad(x, ((0, Np - N), (0, Lp - L), (0, 0)))

    use_mask = (key_padding_mask is not None) or (Lp != L)
    kp = jnp.zeros((Np, Lp), jnp.float32)
    if key_padding_mask is not None:
        kp = kp.at[:N, :L].set(jnp.where(key_padding_mask, _NEG, 0.0).astype(jnp.float32))
    if Lp != L:
        kp = kp.at[:, L:].set(_NEG)                          # mask padded key positions
    kp = kp.reshape(Np, 1, Lp)

    # parameter prep: fold 1/sqrt(hd) into Q projection; bf16 weights, f32 biases
    scale = 1.0 / math.sqrt(E // n_head)
    scale_vec = jnp.concatenate([jnp.full((E,), scale, jnp.float32),
                                 jnp.ones((2 * E,), jnp.float32)])
    wqkv = (params["in_proj_weight"] * scale_vec[:, None]).T.astype(bf16)   # (E, 3E)
    bqkv = (params["in_proj_bias"] * scale_vec).reshape(1, 3 * E)
    wout = params["out_proj_weight"].T.reshape(n_head, E // n_head, E).astype(bf16)
    bout = params["out_proj_bias"].reshape(1, E)
    ln1_g = params["ln1_gamma"].reshape(1, E)
    ln1_b = params["ln1_beta"].reshape(1, E)
    ln2_g = params["ln2_gamma"].reshape(1, E)
    ln2_b = params["ln2_beta"].reshape(1, E)
    wfc = params["c_fc_weight"].T.astype(bf16)               # (E, 4E)
    bfc = params["c_fc_bias"].reshape(1, F)
    wproj = params["c_proj_weight"].T.astype(bf16)           # (4E, E)
    bproj = params["c_proj_bias"].reshape(1, E)

    # MLP hidden-dim tiling (128-aligned chunks)
    cw = min(F, mlp_chunk)
    if cw >= 128:
        cw = (cw // 128) * 128
    mlp_chunks, c0 = [], 0
    while c0 < F:
        w = min(cw, F - c0)
        mlp_chunks.append((c0, w))
        c0 += w
    mlp_chunks = tuple(mlp_chunks)

    # explicit VMEM budget (bf16 weights + f32 activations, pipeline headroom)
    wbytes = 2 * (3 * E * E + E * E + 2 * E * F)
    abytes = 4 * Nb * Lp * (10 * E + 2 * Lp + 2 * cw)
    vmem_limit = int(min(64 << 20, max(32 << 20, 2 * (wbytes + abytes))))

    full = lambda a: pl.BlockSpec(a.shape, lambda b, nd=a.ndim: (0,) * nd)

    out = pl.pallas_call(
        functools.partial(_rab_kernel, n_head=n_head, use_mask=use_mask,
                          mlp_chunks=mlp_chunks),
        out_shape=jax.ShapeDtypeStruct((Np, Lp, E), x_lne.dtype),
        grid=(Np // Nb,),
        in_specs=[
            pl.BlockSpec((Nb, Lp, E), lambda b: (b, 0, 0)),   # x block
            pl.BlockSpec((Nb, 1, Lp), lambda b: (b, 0, 0)),   # key-padding bias
            full(ln1_g), full(ln1_b),
            full(wqkv), full(bqkv),
            full(wout), full(bout),
            full(ln2_g), full(ln2_b),
            full(wfc), full(bfc),
            full(wproj), full(bproj),
        ],
        out_specs=pl.BlockSpec((Nb, Lp, E), lambda b: (b, 0, 0)),
        compiler_params=pltpu.CompilerParams(
            dimension_semantics=("parallel",),                # batch axis -> megacore on v7x
            vmem_limit_bytes=vmem_limit,
        ),
    )(x, kp, ln1_g, ln1_b, wqkv, bqkv, wout, bout,
      ln2_g, ln2_b, wfc, bfc, wproj, bproj)

    return jnp.transpose(out[:N, :L], (1, 0, 2))              # back to (L, N, E)


# ----------------------------- pure-JAX reference -----------------------------


def _reference(x_lne, params, n_head, key_padding_mask=None):
    L, N, E = x_lne.shape
    hd = E // n_head
    rnd = lambda w: w.astype(jnp.bfloat16).astype(jnp.float32)  # match kernel weight precision

    def ln(x, g, b):
        m = jnp.mean(x, -1, keepdims=True)
        v = jnp.mean((x - m) ** 2, -1, keepdims=True)
        return (x - m) / jnp.sqrt(v + 1e-5) * g + b

    x = jnp.transpose(x_lne, (1, 0, 2))  # (N, L, E)
    xn = ln(x, params["ln1_gamma"], params["ln1_beta"])
    qkv = xn @ rnd(params["in_proj_weight"]).T + params["in_proj_bias"]
    q, k, v = jnp.split(qkv, 3, axis=-1)
    q = q.reshape(N, L, n_head, hd).transpose(0, 2, 1, 3) / jnp.sqrt(hd)
    k = k.reshape(N, L, n_head, hd).transpose(0, 2, 1, 3)
    v = v.reshape(N, L, n_head, hd).transpose(0, 2, 1, 3)
    s = jnp.einsum("bhqd,bhkd->bhqk", q, k)
    if key_padding_mask is not None:
        s = s + jnp.where(key_padding_mask, _NEG, 0.0)[:, None, None, :]
    p = jax.nn.softmax(s, axis=-1)
    o = jnp.einsum("bhqk,bhkd->bhqd", p, v).transpose(0, 2, 1, 3).reshape(N, L, E)
    o = o @ rnd(params["out_proj_weight"]).T + params["out_proj_bias"]
    x = x + o
    xn2 = ln(x, params["ln2_gamma"], params["ln2_beta"])
    h1 = xn2 @ rnd(params["c_fc_weight"]).T + params["c_fc_bias"]
    h1 = h1 * jax.nn.sigmoid(1.702 * h1)
    x = x + h1 @ rnd(params["c_proj_weight"]).T + params["c_proj_bias"]
    return jnp.transpose(x, (1, 0, 2))


# ----------------------------- main -------------------------------------------


if __name__ == "__main__":
    L, N, E, H = 8, 2, 32, 4   # seq, batch, d_model, n_head

    key = jax.random.PRNGKey(0)
    kx, kparam = jax.random.split(key)
    x = jax.random.normal(kx, (L, N, E), jnp.float32)
    params = init_params(kparam, E, H)

    # forward (attn_mask=None, key_padding_mask=None, matching module defaults)
    y = residual_attention_block(x, params, n_head=H, key_padding_mask=None)
    y = jax.block_until_ready(y)

    y_ref = _reference(x, params, H, None)
    assert y.shape == (L, N, E)
    max_err = float(jnp.max(jnp.abs(y - y_ref)))
    assert jnp.allclose(y, y_ref, rtol=2e-2, atol=2e-2), f"mismatch vs reference: {max_err}"

    print("KERNEL_OK")
</pallas_src>

<mosaic_0001>
module attributes {stable_mosaic.version = 11 : i64} {
  func.func @_rab_kernel(%arg0: i32, %arg1: memref<2x8x32xf32, #tpu.memory_space<vmem>>, %arg2: memref<2x1x8xf32, #tpu.memory_space<vmem>>, %arg3: memref<1x32xf32, #tpu.memory_space<vmem>>, %arg4: memref<1x32xf32, #tpu.memory_space<vmem>>, %arg5: memref<32x96xbf16, #tpu.memory_space<vmem>>, %arg6: memref<1x96xf32, #tpu.memory_space<vmem>>, %arg7: memref<4x8x32xbf16, #tpu.memory_space<vmem>>, %arg8: memref<1x32xf32, #tpu.memory_space<vmem>>, %arg9: memref<1x32xf32, #tpu.memory_space<vmem>>, %arg10: memref<1x32xf32, #tpu.memory_space<vmem>>, %arg11: memref<32x128xbf16, #tpu.memory_space<vmem>>, %arg12: memref<1x128xf32, #tpu.memory_space<vmem>>, %arg13: memref<128x32xbf16, #tpu.memory_space<vmem>>, %arg14: memref<1x32xf32, #tpu.memory_space<vmem>>, %arg15: memref<2x8x32xf32, #tpu.memory_space<vmem>>) attributes {dimension_semantics = [#tpu.dimension_semantics<parallel>], iteration_bounds = array<i64: 1>, scalar_prefetch = 0 : i64, scratch_operands = 0 : i64, tpu.core_type = #tpu.core_type<tc>, window_params = [{transform_indices = @transform_0, window_bounds = array<i64: 2, 8, 32>}, {transform_indices = @transform_1, window_bounds = array<i64: 2, 1, 8>}, {pipeline_mode = #tpu.pipeline_mode<synchronous>, transform_indices = @transform_2, window_bounds = array<i64: 1, 32>}, {pipeline_mode = #tpu.pipeline_mode<synchronous>, transform_indices = @transform_3, window_bounds = array<i64: 1, 32>}, {pipeline_mode = #tpu.pipeline_mode<synchronous>, transform_indices = @transform_4, window_bounds = array<i64: 32, 96>}, {pipeline_mode = #tpu.pipeline_mode<synchronous>, transform_indices = @transform_5, window_bounds = array<i64: 1, 96>}, {pipeline_mode = #tpu.pipeline_mode<synchronous>, transform_indices = @transform_6, window_bounds = array<i64: 4, 8, 32>}, {pipeline_mode = #tpu.pipeline_mode<synchronous>, transform_indices = @transform_7, window_bounds = array<i64: 1, 32>}, {pipeline_mode = #tpu.pipeline_mode<synchronous>, transform_indices = @transform_8, window_bounds = array<i64: 1, 32>}, {pipeline_mode = #tpu.pipeline_mode<synchronous>, transform_indices = @transform_9, window_bounds = array<i64: 1, 32>}, {pipeline_mode = #tpu.pipeline_mode<synchronous>, transform_indices = @transform_10, window_bounds = array<i64: 32, 128>}, {pipeline_mode = #tpu.pipeline_mode<synchronous>, transform_indices = @transform_11, window_bounds = array<i64: 1, 128>}, {pipeline_mode = #tpu.pipeline_mode<synchronous>, transform_indices = @transform_12, window_bounds = array<i64: 128, 32>}, {pipeline_mode = #tpu.pipeline_mode<synchronous>, transform_indices = @transform_13, window_bounds = array<i64: 1, 32>}, {transform_indices = @transform_14, window_bounds = array<i64: 2, 8, 32>}]} {
    %c0 = arith.constant 0 : index
    %c0_0 = arith.constant 0 : index
    %c0_1 = arith.constant 0 : index
    %0 = vector.load %arg1[%c0, %c0_0, %c0_1] : memref<2x8x32xf32, #tpu.memory_space<vmem>>, vector<2x8x32xf32>
    %1 = vector.shape_cast %0 : vector<2x8x32xf32> to vector<16x32xf32>
    %c0_2 = arith.constant 0 : index
    %c0_3 = arith.constant 0 : index
    %2 = vector.load %arg3[%c0_2, %c0_3] : memref<1x32xf32, #tpu.memory_space<vmem>>, vector<1x32xf32>
    %c0_4 = arith.constant 0 : index
    %c0_5 = arith.constant 0 : index
    %3 = vector.load %arg4[%c0_4, %c0_5] : memref<1x32xf32, #tpu.memory_space<vmem>>, vector<1x32xf32>
    %cst = arith.constant dense<0.000000e+00> : vector<16xf32>
    %4 = vector.multi_reduction <add>, %1, %cst [1] : vector<16x32xf32> to vector<16xf32>
    %5 = vector.shape_cast %4 : vector<16xf32> to vector<16x1xf32>
    %cst_6 = arith.constant 3.200000e+01 : f32
    %6 = vector.broadcast %cst_6 : f32 to vector<16x1xf32>
    %7 = arith.divf %5, %6 : vector<16x1xf32>
    %8 = vector.broadcast %7 : vector<16x1xf32> to vector<16x32xf32>
    %9 = arith.subf %1, %8 : vector<16x32xf32>
    %10 = arith.mulf %9, %9 : vector<16x32xf32>
    %cst_7 = arith.constant dense<0.000000e+00> : vector<16xf32>
    %11 = vector.multi_reduction <add>, %10, %cst_7 [1] : vector<16x32xf32> to vector<16xf32>
    %12 = vector.shape_cast %11 : vector<16xf32> to vector<16x1xf32>
    %cst_8 = arith.constant 3.200000e+01 : f32
    %13 = vector.broadcast %cst_8 : f32 to vector<16x1xf32>
    %14 = arith.divf %12, %13 : vector<16x1xf32>
    %15 = vector.broadcast %7 : vector<16x1xf32> to vector<16x32xf32>
    %16 = arith.subf %1, %15 : vector<16x32xf32>
    %cst_9 = arith.constant 9.99999974E-6 : f32
    %17 = vector.broadcast %cst_9 : f32 to vector<16x1xf32>
    %18 = arith.addf %14, %17 : vector<16x1xf32>
    %19 = math.rsqrt %18 : vector<16x1xf32>
    %20 = vector.broadcast %19 : vector<16x1xf32> to vector<16x32xf32>
    %21 = arith.mulf %16, %20 : vector<16x32xf32>
    %22 = vector.broadcast %2 : vector<1x32xf32> to vector<16x32xf32>
    %23 = arith.mulf %21, %22 : vector<16x32xf32>
    %24 = vector.broadcast %3 : vector<1x32xf32> to vector<16x32xf32>
    %25 = arith.addf %23, %24 : vector<16x32xf32>
    %26 = arith.truncf %25 : vector<16x32xf32> to vector<16x32xbf16>
    %c0_10 = arith.constant 0 : index
    %c0_11 = arith.constant 0 : index
    %27 = vector.load %arg5[%c0_10, %c0_11] : memref<32x96xbf16, #tpu.memory_space<vmem>>, vector<32x96xbf16>
    %cst_12 = arith.constant dense<0.000000e+00> : vector<16x96xf32>
    %28 = tpu.matmul %26, %27, %cst_12 {dimension_numbers = #tpu.dot_dimension_numbers<[1], [0], [0], [1], [0, 0, 1, 1], [], []>} : vector<16x32xbf16>, vector<32x96xbf16>, vector<16x96xf32> -> vector<16x96xf32>
    %c0_13 = arith.constant 0 : index
    %c0_14 = arith.constant 0 : index
    %29 = vector.load %arg6[%c0_13, %c0_14] : memref<1x96xf32, #tpu.memory_space<vmem>>, vector<1x96xf32>
    %30 = vector.broadcast %29 : vector<1x96xf32> to vector<16x96xf32>
    %31 = arith.addf %28, %30 : vector<16x96xf32>
    %32 = vector.extract_strided_slice %31 {offsets = [0, 0], sizes = [16, 32], strides = [1, 1]} : vector<16x96xf32> to vector<16x32xf32>
    %33 = arith.truncf %32 : vector<16x32xf32> to vector<16x32xbf16>
    %34 = vector.shape_cast %33 : vector<16x32xbf16> to vector<2x8x32xbf16>
    %35 = vector.extract_strided_slice %31 {offsets = [0, 32], sizes = [16, 32], strides = [1, 1]} : vector<16x96xf32> to vector<16x32xf32>
    %36 = arith.truncf %35 : vector<16x32xf32> to vector<16x32xbf16>
    %37 = vector.shape_cast %36 : vector<16x32xbf16> to vector<2x8x32xbf16>
    %38 = vector.extract_strided_slice %31 {offsets = [0, 64], sizes = [16, 32], strides = [1, 1]} : vector<16x96xf32> to vector<16x32xf32>
    %39 = arith.truncf %38 : vector<16x32xf32> to vector<16x32xbf16>
    %40 = vector.shape_cast %39 : vector<16x32xbf16> to vector<2x8x32xbf16>
    %cst_15 = arith.constant 0.000000e+00 : f32
    %41 = vector.broadcast %cst_15 : f32 to vector<16x32xf32>
    %42 = vector.extract_strided_slice %34 {offsets = [0, 0, 0], sizes = [2, 8, 8], strides = [1, 1, 1]} : vector<2x8x32xbf16> to vector<2x8x8xbf16>
    %43 = vector.extract_strided_slice %37 {offsets = [0, 0, 0], sizes = [2, 8, 8], strides = [1, 1, 1]} : vector<2x8x32xbf16> to vector<2x8x8xbf16>
    "tpu.trace_start"() <{level = 10 : i32, message = "bqd,bkd->bqk"}> : () -> ()
    %cst_16 = arith.constant dense<0.000000e+00> : vector<2x8x8xf32>
    %44 = tpu.matmul %42, %43, %cst_16 {dimension_numbers = #tpu.dot_dimension_numbers<[2], [2], [1], [1], [0, 0, 0, 1, 1, 1], [0], [0]>} : vector<2x8x8xbf16>, vector<2x8x8xbf16>, vector<2x8x8xf32> -> vector<2x8x8xf32>
    "tpu.trace_stop"() : () -> ()
    %cst_17 = arith.constant dense<0xFF800000> : vector<2x8xf32>
    %45 = vector.multi_reduction <maximumf>, %44, %cst_17 [2] : vector<2x8x8xf32> to vector<2x8xf32>
    %46 = vector.shape_cast %45 : vector<2x8xf32> to vector<2x8x1xf32>
    %47 = vector.broadcast %46 : vector<2x8x1xf32> to vector<2x8x8xf32>
    %48 = arith.subf %44, %47 : vector<2x8x8xf32>
    %49 = math.exp %48 : vector<2x8x8xf32>
    %cst_18 = arith.constant dense<0.000000e+00> : vector<2x8xf32>
    %50 = vector.multi_reduction <add>, %49, %cst_18 [2] : vector<2x8x8xf32> to vector<2x8xf32>
    %51 = vector.shape_cast %50 : vector<2x8xf32> to vector<2x8x1xf32>
    %52 = tpu.reciprocal %51 {approx = true} : vector<2x8x1xf32> -> vector<2x8x1xf32>
    %53 = vector.broadcast %52 : vector<2x8x1xf32> to vector<2x8x8xf32>
    %54 = arith.mulf %49, %53 : vector<2x8x8xf32>
    %55 = arith.truncf %54 : vector<2x8x8xf32> to vector<2x8x8xbf16>
    %56 = vector.extract_strided_slice %40 {offsets = [0, 0, 0], sizes = [2, 8, 8], strides = [1, 1, 1]} : vector<2x8x32xbf16> to vector<2x8x8xbf16>
    "tpu.trace_start"() <{level = 10 : i32, message = "bqk,bkd->bqd"}> : () -> ()
    %cst_19 = arith.constant dense<0.000000e+00> : vector<2x8x8xf32>
    %57 = tpu.matmul %55, %56, %cst_19 {dimension_numbers = #tpu.dot_dimension_numbers<[2], [1], [1], [2], [0, 0, 0, 1, 1, 2], [0], [0]>} : vector<2x8x8xbf16>, vector<2x8x8xbf16>, vector<2x8x8xf32> -> vector<2x8x8xf32>
    "tpu.trace_stop"() : () -> ()
    %58 = vector.shape_cast %57 : vector<2x8x8xf32> to vector<16x8xf32>
    %59 = arith.truncf %58 : vector<16x8xf32> to vector<16x8xbf16>
    %c0_20 = arith.constant 0 : index
    %c0_21 = arith.constant 0 : index
    %c0_22 = arith.constant 0 : index
    %60 = vector.load %arg7[%c0_20, %c0_21, %c0_22] : memref<4x8x32xbf16, #tpu.memory_space<vmem>>, vector<1x8x32xbf16>
    %61 = vector.shape_cast %60 : vector<1x8x32xbf16> to vector<8x32xbf16>
    %cst_23 = arith.constant dense<0.000000e+00> : vector<16x32xf32>
    %62 = tpu.matmul %59, %61, %cst_23 {dimension_numbers = #tpu.dot_dimension_numbers<[1], [0], [0], [1], [0, 0, 1, 1], [], []>} : vector<16x8xbf16>, vector<8x32xbf16>, vector<16x32xf32> -> vector<16x32xf32>
    %63 = arith.addf %41, %62 : vector<16x32xf32>
    %64 = vector.extract_strided_slice %34 {offsets = [0, 0, 8], sizes = [2, 8, 8], strides = [1, 1, 1]} : vector<2x8x32xbf16> to vector<2x8x8xbf16>
    %65 = vector.extract_strided_slice %37 {offsets = [0, 0, 8], sizes = [2, 8, 8], strides = [1, 1, 1]} : vector<2x8x32xbf16> to vector<2x8x8xbf16>
    "tpu.trace_start"() <{level = 10 : i32, message = "bqd,bkd->bqk"}> : () -> ()
    %cst_24 = arith.constant dense<0.000000e+00> : vector<2x8x8xf32>
    %66 = tpu.matmul %64, %65, %cst_24 {dimension_numbers = #tpu.dot_dimension_numbers<[2], [2], [1], [1], [0, 0, 0, 1, 1, 1], [0], [0]>} : vector<2x8x8xbf16>, vector<2x8x8xbf16>, vector<2x8x8xf32> -> vector<2x8x8xf32>
    "tpu.trace_stop"() : () -> ()
    %cst_25 = arith.constant dense<0xFF800000> : vector<2x8xf32>
    %67 = vector.multi_reduction <maximumf>, %66, %cst_25 [2] : vector<2x8x8xf32> to vector<2x8xf32>
    %68 = vector.shape_cast %67 : vector<2x8xf32> to vector<2x8x1xf32>
    %69 = vector.broadcast %68 : vector<2x8x1xf32> to vector<2x8x8xf32>
    %70 = arith.subf %66, %69 : vector<2x8x8xf32>
    %71 = math.exp %70 : vector<2x8x8xf32>
    %cst_26 = arith.constant dense<0.000000e+00> : vector<2x8xf32>
    %72 = vector.multi_reduction <add>, %71, %cst_26 [2] : vector<2x8x8xf32> to vector<2x8xf32>
    %73 = vector.shape_cast %72 : vector<2x8xf32> to vector<2x8x1xf32>
    %74 = tpu.reciprocal %73 {approx = true} : vector<2x8x1xf32> -> vector<2x8x1xf32>
    %75 = vector.broadcast %74 : vector<2x8x1xf32> to vector<2x8x8xf32>
    %76 = arith.mulf %71, %75 : vector<2x8x8xf32>
    %77 = arith.truncf %76 : vector<2x8x8xf32> to vector<2x8x8xbf16>
    %78 = vector.extract_strided_slice %40 {offsets = [0, 0, 8], sizes = [2, 8, 8], strides = [1, 1, 1]} : vector<2x8x32xbf16> to vector<2x8x8xbf16>
    "tpu.trace_start"() <{level = 10 : i32, message = "bqk,bkd->bqd"}> : () -> ()
    %cst_27 = arith.constant dense<0.000000e+00> : vector<2x8x8xf32>
    %79 = tpu.matmul %77, %78, %cst_27 {dimension_numbers = #tpu.dot_dimension_numbers<[2], [1], [1], [2], [0, 0, 0, 1, 1, 2], [0], [0]>} : vector<2x8x8xbf16>, vector<2x8x8xbf16>, vector<2x8x8xf32> -> vector<2x8x8xf32>
    "tpu.trace_stop"() : () -> ()
    %80 = vector.shape_cast %79 : vector<2x8x8xf32> to vector<16x8xf32>
    %81 = arith.truncf %80 : vector<16x8xf32> to vector<16x8xbf16>
    %c1 = arith.constant 1 : index
    %c0_28 = arith.constant 0 : index
    %c0_29 = arith.constant 0 : index
    %82 = vector.load %arg7[%c1, %c0_28, %c0_29] : memref<4x8x32xbf16, #tpu.memory_space<vmem>>, vector<1x8x32xbf16>
    %83 = vector.shape_cast %82 : vector<1x8x32xbf16> to vector<8x32xbf16>
    %cst_30 = arith.constant dense<0.000000e+00> : vector<16x32xf32>
    %84 = tpu.matmul %81, %83, %cst_30 {dimension_numbers = #tpu.dot_dimension_numbers<[1], [0], [0], [1], [0, 0, 1, 1], [], []>} : vector<16x8xbf16>, vector<8x32xbf16>, vector<16x32xf32> -> vector<16x32xf32>
    %85 = arith.addf %63, %84 : vector<16x32xf32>
    %86 = vector.extract_strided_slice %34 {offsets = [0, 0, 16], sizes = [2, 8, 8], strides = [1, 1, 1]} : vector<2x8x32xbf16> to vector<2x8x8xbf16>
    %87 = vector.extract_strided_slice %37 {offsets = [0, 0, 16], sizes = [2, 8, 8], strides = [1, 1, 1]} : vector<2x8x32xbf16> to vector<2x8x8xbf16>
    "tpu.trace_start"() <{level = 10 : i32, message = "bqd,bkd->bqk"}> : () -> ()
    %cst_31 = arith.constant dense<0.000000e+00> : vector<2x8x8xf32>
    %88 = tpu.matmul %86, %87, %cst_31 {dimension_numbers = #tpu.dot_dimension_numbers<[2], [2], [1], [1], [0, 0, 0, 1, 1, 1], [0], [0]>} : vector<2x8x8xbf16>, vector<2x8x8xbf16>, vector<2x8x8xf32> -> vector<2x8x8xf32>
    "tpu.trace_stop"() : () -> ()
    %cst_32 = arith.constant dense<0xFF800000> : vector<2x8xf32>
    %89 = vector.multi_reduction <maximumf>, %88, %cst_32 [2] : vector<2x8x8xf32> to vector<2x8xf32>
    %90 = vector.shape_cast %89 : vector<2x8xf32> to vector<2x8x1xf32>
    %91 = vector.broadcast %90 : vector<2x8x1xf32> to vector<2x8x8xf32>
    %92 = arith.subf %88, %91 : vector<2x8x8xf32>
    %93 = math.exp %92 : vector<2x8x8xf32>
    %cst_33 = arith.constant dense<0.000000e+00> : vector<2x8xf32>
    %94 = vector.multi_reduction <add>, %93, %cst_33 [2] : vector<2x8x8xf32> to vector<2x8xf32>
    %95 = vector.shape_cast %94 : vector<2x8xf32> to vector<2x8x1xf32>
    %96 = tpu.reciprocal %95 {approx = true} : vector<2x8x1xf32> -> vector<2x8x1xf32>
    %97 = vector.broadcast %96 : vector<2x8x1xf32> to vector<2x8x8xf32>
    %98 = arith.mulf %93, %97 : vector<2x8x8xf32>
    %99 = arith.truncf %98 : vector<2x8x8xf32> to vector<2x8x8xbf16>
    %100 = vector.extract_strided_slice %40 {offsets = [0, 0, 16], sizes = [2, 8, 8], strides = [1, 1, 1]} : vector<2x8x32xbf16> to vector<2x8x8xbf16>
    "tpu.trace_start"() <{level = 10 : i32, message = "bqk,bkd->bqd"}> : () -> ()
    %cst_34 = arith.constant dense<0.000000e+00> : vector<2x8x8xf32>
    %101 = tpu.matmul %99, %100, %cst_34 {dimension_numbers = #tpu.dot_dimension_numbers<[2], [1], [1], [2], [0, 0, 0, 1, 1, 2], [0], [0]>} : vector<2x8x8xbf16>, vector<2x8x8xbf16>, vector<2x8x8xf32> -> vector<2x8x8xf32>
    "tpu.trace_stop"() : () -> ()
    %102 = vector.shape_cast %101 : vector<2x8x8xf32> to vector<16x8xf32>
    %103 = arith.truncf %102 : vector<16x8xf32> to vector<16x8xbf16>
    %c2 = arith.constant 2 : index
    %c0_35 = arith.constant 0 : index
    %c0_36 = arith.constant 0 : index
    %104 = vector.load %arg7[%c2, %c0_35, %c0_36] : memref<4x8x32xbf16, #tpu.memory_space<vmem>>, vector<1x8x32xbf16>
    %105 = vector.shape_cast %104 : vector<1x8x32xbf16> to vector<8x32xbf16>
    %cst_37 = arith.constant dense<0.000000e+00> : vector<16x32xf32>
    %106 = tpu.matmul %103, %105, %cst_37 {dimension_numbers = #tpu.dot_dimension_numbers<[1], [0], [0], [1], [0, 0, 1, 1], [], []>} : vector<16x8xbf16>, vector<8x32xbf16>, vector<16x32xf32> -> vector<16x32xf32>
    %107 = arith.addf %85, %106 : vector<16x32xf32>
    %108 = vector.extract_strided_slice %34 {offsets = [0, 0, 24], sizes = [2, 8, 8], strides = [1, 1, 1]} : vector<2x8x32xbf16> to vector<2x8x8xbf16>
    %109 = vector.extract_strided_slice %37 {offsets = [0, 0, 24], sizes = [2, 8, 8], strides = [1, 1, 1]} : vector<2x8x32xbf16> to vector<2x8x8xbf16>
    "tpu.trace_start"() <{level = 10 : i32, message = "bqd,bkd->bqk"}> : () -> ()
    %cst_38 = arith.constant dense<0.000000e+00> : vector<2x8x8xf32>
    %110 = tpu.matmul %108, %109, %cst_38 {dimension_numbers = #tpu.dot_dimension_numbers<[2], [2], [1], [1], [0, 0, 0, 1, 1, 1], [0], [0]>} : vector<2x8x8xbf16>, vector<2x8x8xbf16>, vector<2x8x8xf32> -> vector<2x8x8xf32>
    "tpu.trace_stop"() : () -> ()
    %cst_39 = arith.constant dense<0xFF800000> : vector<2x8xf32>
    %111 = vector.multi_reduction <maximumf>, %110, %cst_39 [2] : vector<2x8x8xf32> to vector<2x8xf32>
    %112 = vector.shape_cast %111 : vector<2x8xf32> to vector<2x8x1xf32>
    %113 = vector.broadcast %112 : vector<2x8x1xf32> to vector<2x8x8xf32>
    %114 = arith.subf %110, %113 : vector<2x8x8xf32>
    %115 = math.exp %114 : vector<2x8x8xf32>
    %cst_40 = arith.constant dense<0.000000e+00> : vector<2x8xf32>
    %116 = vector.multi_reduction <add>, %115, %cst_40 [2] : vector<2x8x8xf32> to vector<2x8xf32>
    %117 = vector.shape_cast %116 : vector<2x8xf32> to vector<2x8x1xf32>
    %118 = tpu.reciprocal %117 {approx = true} : vector<2x8x1xf32> -> vector<2x8x1xf32>
    %119 = vector.broadcast %118 : vector<2x8x1xf32> to vector<2x8x8xf32>
    %120 = arith.mulf %115, %119 : vector<2x8x8xf32>
    %121 = arith.truncf %120 : vector<2x8x8xf32> to vector<2x8x8xbf16>
    %122 = vector.extract_strided_slice %40 {offsets = [0, 0, 24], sizes = [2, 8, 8], strides = [1, 1, 1]} : vector<2x8x32xbf16> to vector<2x8x8xbf16>
    "tpu.trace_start"() <{level = 10 : i32, message = "bqk,bkd->bqd"}> : () -> ()
    %cst_41 = arith.constant dense<0.000000e+00> : vector<2x8x8xf32>
    %123 = tpu.matmul %121, %122, %cst_41 {dimension_numbers = #tpu.dot_dimension_numbers<[2], [1], [1], [2], [0, 0, 0, 1, 1, 2], [0], [0]>} : vector<2x8x8xbf16>, vector<2x8x8xbf16>, vector<2x8x8xf32> -> vector<2x8x8xf32>
    "tpu.trace_stop"() : () -> ()
    %124 = vector.shape_cast %123 : vector<2x8x8xf32> to vector<16x8xf32>
    %125 = arith.truncf %124 : vector<16x8xf32> to vector<16x8xbf16>
    %c3 = arith.constant 3 : index
    %c0_42 = arith.constant 0 : index
    %c0_43 = arith.constant 0 : index
    %126 = vector.load %arg7[%c3, %c0_42, %c0_43] : memref<4x8x32xbf16, #tpu.memory_space<vmem>>, vector<1x8x32xbf16>
    %127 = vector.shape_cast %126 : vector<1x8x32xbf16> to vector<8x32xbf16>
    %cst_44 = arith.constant dense<0.000000e+00> : vector<16x32xf32>
    %128 = tpu.matmul %125, %127, %cst_44 {dimension_numbers = #tpu.dot_dimension_numbers<[1], [0], [0], [1], [0, 0, 1, 1], [], []>} : vector<16x8xbf16>, vector<8x32xbf16>, vector<16x32xf32> -> vector<16x32xf32>
    %129 = arith.addf %107, %128 : vector<16x32xf32>
    %130 = arith.addf %1, %129 : vector<16x32xf32>
    %c0_45 = arith.constant 0 : index
    %c0_46 = arith.constant 0 : index
    %131 = vector.load %arg8[%c0_45, %c0_46] : memref<1x32xf32, #tpu.memory_space<vmem>>, vector<1x32xf32>
    %132 = vector.broadcast %131 : vector<1x32xf32> to vector<16x32xf32>
    %133 = arith.addf %130, %132 : vector<16x32xf32>
    %c0_47 = arith.constant 0 : index
    %c0_48 = arith.constant 0 : index
    %134 = vector.load %arg9[%c0_47, %c0_48] : memref<1x32xf32, #tpu.memory_space<vmem>>, vector<1x32xf32>
    %c0_49 = arith.constant 0 : index
    %c0_50 = arith.constant 0 : index
    %135 = vector.load %arg10[%c0_49, %c0_50] : memref<1x32xf32, #tpu.memory_space<vmem>>, vector<1x32xf32>
    %cst_51 = arith.constant dense<0.000000e+00> : vector<16xf32>
    %136 = vector.multi_reduction <add>, %133, %cst_51 [1] : vector<16x32xf32> to vector<16xf32>
    %137 = vector.shape_cast %136 : vector<16xf32> to vector<16x1xf32>
    %cst_52 = arith.constant 3.200000e+01 : f32
    %138 = vector.broadcast %cst_52 : f32 to vector<16x1xf32>
    %139 = arith.divf %137, %138 : vector<16x1xf32>
    %140 = vector.broadcast %139 : vector<16x1xf32> to vector<16x32xf32>
    %141 = arith.subf %133, %140 : vector<16x32xf32>
    %142 = arith.mulf %141, %141 : vector<16x32xf32>
    %cst_53 = arith.constant dense<0.000000e+00> : vector<16xf32>
    %143 = vector.multi_reduction <add>, %142, %cst_53 [1] : vector<16x32xf32> to vector<16xf32>
    %144 = vector.shape_cast %143 : vector<16xf32> to vector<16x1xf32>
    %cst_54 = arith.constant 3.200000e+01 : f32
    %145 = vector.broadcast %cst_54 : f32 to vector<16x1xf32>
    %146 = arith.divf %144, %145 : vector<16x1xf32>
    %147 = vector.broadcast %139 : vector<16x1xf32> to vector<16x32xf32>
    %148 = arith.subf %133, %147 : vector<16x32xf32>
    %cst_55 = arith.constant 9.99999974E-6 : f32
    %149 = vector.broadcast %cst_55 : f32 to vector<16x1xf32>
    %150 = arith.addf %146, %149 : vector<16x1xf32>
    %151 = math.rsqrt %150 : vector<16x1xf32>
    %152 = vector.broadcast %151 : vector<16x1xf32> to vector<16x32xf32>
    %153 = arith.mulf %148, %152 : vector<16x32xf32>
    %154 = vector.broadcast %134 : vector<1x32xf32> to vector<16x32xf32>
    %155 = arith.mulf %153, %154 : vector<16x32xf32>
    %156 = vector.broadcast %135 : vector<1x32xf32> to vector<16x32xf32>
    %157 = arith.addf %155, %156 : vector<16x32xf32>
    %158 = arith.truncf %157 : vector<16x32xf32> to vector<16x32xbf16>
    %cst_56 = arith.constant 0.000000e+00 : f32
    %159 = vector.broadcast %cst_56 : f32 to vector<16x32xf32>
    %c0_57 = arith.constant 0 : index
    %c0_58 = arith.constant 0 : index
    %160 = vector.load %arg11[%c0_57, %c0_58] : memref<32x128xbf16, #tpu.memory_space<vmem>>, vector<32x128xbf16>
    %cst_59 = arith.constant dense<0.000000e+00> : vector<16x128xf32>
    %161 = tpu.matmul %158, %160, %cst_59 {dimension_numbers = #tpu.dot_dimension_numbers<[1], [0], [0], [1], [0, 0, 1, 1], [], []>} : vector<16x32xbf16>, vector<32x128xbf16>, vector<16x128xf32> -> vector<16x128xf32>
    %c0_60 = arith.constant 0 : index
    %c0_61 = arith.constant 0 : index
    %162 = vector.load %arg12[%c0_60, %c0_61] : memref<1x128xf32, #tpu.memory_space<vmem>>, vector<1x128xf32>
    %163 = vector.broadcast %162 : vector<1x128xf32> to vector<16x128xf32>
    %164 = arith.addf %161, %163 : vector<16x128xf32>
    %cst_62 = arith.constant 1.702000e+00 : f32
    %165 = vector.broadcast %cst_62 : f32 to vector<16x128xf32>
    %166 = arith.mulf %165, %164 : vector<16x128xf32>
    %167 = arith.negf %166 : vector<16x128xf32>
    %168 = math.exp %167 : vector<16x128xf32>
    %cst_63 = arith.constant 1.000000e+00 : f32
    %169 = vector.broadcast %cst_63 : f32 to vector<16x128xf32>
    %170 = arith.addf %169, %168 : vector<16x128xf32>
    %171 = arith.divf %169, %170 : vector<16x128xf32>
    %172 = arith.mulf %164, %171 : vector<16x128xf32>
    %173 = arith.truncf %172 : vector<16x128xf32> to vector<16x128xbf16>
    %c0_64 = arith.constant 0 : index
    %c0_65 = arith.constant 0 : index
    %174 = vector.load %arg13[%c0_64, %c0_65] : memref<128x32xbf16, #tpu.memory_space<vmem>>, vector<128x32xbf16>
    %cst_66 = arith.constant dense<0.000000e+00> : vector<16x32xf32>
    %175 = tpu.matmul %173, %174, %cst_66 {dimension_numbers = #tpu.dot_dimension_numbers<[1], [0], [0], [1], [0, 0, 1, 1], [], []>} : vector<16x128xbf16>, vector<128x32xbf16>, vector<16x32xf32> -> vector<16x32xf32>
    %176 = arith.addf %159, %175 : vector<16x32xf32>
    %177 = arith.addf %133, %176 : vector<16x32xf32>
    %c0_67 = arith.constant 0 : index
    %c0_68 = arith.constant 0 : index
    %178 = vector.load %arg14[%c0_67, %c0_68] : memref<1x32xf32, #tpu.memory_space<vmem>>, vector<1x32xf32>
    %179 = vector.broadcast %178 : vector<1x32xf32> to vector<16x32xf32>
    %180 = arith.addf %177, %179 : vector<16x32xf32>
    %181 = vector.shape_cast %180 : vector<16x32xf32> to vector<2x8x32xf32>
    %c0_69 = arith.constant 0 : index
    %c0_70 = arith.constant 0 : index
    %c0_71 = arith.constant 0 : index
    %182 = vector.load %arg15[%c0_69, %c0_70, %c0_71] : memref<2x8x32xf32, #tpu.memory_space<vmem>>, vector<2x8x32xf32>
    tpu.vector_store %arg15[%c0_69, %c0_70, %c0_71], %181 {strides = array<i32>} : memref<2x8x32xf32, #tpu.memory_space<vmem>>, vector<2x8x32xf32>,
    return
  }
  func.func @transform_0(%arg0: i32) -> (i32, i32, i32) {
    %c0_i32 = arith.constant 0 : i32
    %c0_i32_0 = arith.constant 0 : i32
    %c0_i32_1 = arith.constant 0 : i32
    return %arg0, %c0_i32, %c0_i32_0 : i32, i32, i32
  }
  func.func @transform_1(%arg0: i32) -> (i32, i32, i32) {
    %c0_i32 = arith.constant 0 : i32
    %c0_i32_0 = arith.constant 0 : i32
    %c0_i32_1 = arith.constant 0 : i32
    return %arg0, %c0_i32, %c0_i32_0 : i32, i32, i32
  }
  func.func @transform_2(%arg0: i32) -> (i32, i32) {
    %c0_i32 = arith.constant 0 : i32
    %c0_i32_0 = arith.constant 0 : i32
    %c0_i32_1 = arith.constant 0 : i32
    return %c0_i32, %c0_i32_0 : i32, i32
  }
  func.func @transform_3(%arg0: i32) -> (i32, i32) {
    %c0_i32 = arith.constant 0 : i32
    %c0_i32_0 = arith.constant 0 : i32
    %c0_i32_1 = arith.constant 0 : i32
    return %c0_i32, %c0_i32_0 : i32, i32
  }
  func.func @transform_4(%arg0: i32) -> (i32, i32) {
    %c0_i32 = arith.constant 0 : i32
    %c0_i32_0 = arith.constant 0 : i32
    %c0_i32_1 = arith.constant 0 : i32
    return %c0_i32, %c0_i32_0 : i32, i32
  }
  func.func @transform_5(%arg0: i32) -> (i32, i32) {
    %c0_i32 = arith.constant 0 : i32
    %c0_i32_0 = arith.constant 0 : i32
    %c0_i32_1 = arith.constant 0 : i32
    return %c0_i32, %c0_i32_0 : i32, i32
  }
  func.func @transform_6(%arg0: i32) -> (i32, i32, i32) {
    %c0_i32 = arith.constant 0 : i32
    %c0_i32_0 = arith.constant 0 : i32
    %c0_i32_1 = arith.constant 0 : i32
    %c0_i32_2 = arith.constant 0 : i32
    return %c0_i32, %c0_i32_0, %c0_i32_1 : i32, i32, i32
  }
  func.func @transform_7(%arg0: i32) -> (i32, i32) {
    %c0_i32 = arith.constant 0 : i32
    %c0_i32_0 = arith.constant 0 : i32
    %c0_i32_1 = arith.constant 0 : i32
    return %c0_i32, %c0_i32_0 : i32, i32
  }
  func.func @transform_8(%arg0: i32) -> (i32, i32) {
    %c0_i32 = arith.constant 0 : i32
    %c0_i32_0 = arith.constant 0 : i32
    %c0_i32_1 = arith.constant 0 : i32
    return %c0_i32, %c0_i32_0 : i32, i32
  }
  func.func @transform_9(%arg0: i32) -> (i32, i32) {
    %c0_i32 = arith.constant 0 : i32
    %c0_i32_0 = arith.constant 0 : i32
    %c0_i32_1 = arith.constant 0 : i32
    return %c0_i32, %c0_i32_0 : i32, i32
  }
  func.func @transform_10(%arg0: i32) -> (i32, i32) {
    %c0_i32 = arith.constant 0 : i32
    %c0_i32_0 = arith.constant 0 : i32
    %c0_i32_1 = arith.constant 0 : i32
    return %c0_i32, %c0_i32_0 : i32, i32
  }
  func.func @transform_11(%arg0: i32) -> (i32, i32) {
    %c0_i32 = arith.constant 0 : i32
    %c0_i32_0 = arith.constant 0 : i32
    %c0_i32_1 = arith.constant 0 : i32
    return %c0_i32, %c0_i32_0 : i32, i32
  }
  func.func @transform_12(%arg0: i32) -> (i32, i32) {
    %c0_i32 = arith.constant 0 : i32
    %c0_i32_0 = arith.constant 0 : i32
    %c0_i32_1 = arith.constant 0 : i32
    return %c0_i32, %c0_i32_0 : i32, i32
  }
  func.func @transform_13(%arg0: i32) -> (i32, i32) {
    %c0_i32 = arith.constant 0 : i32
    %c0_i32_0 = arith.constant 0 : i32
    %c0_i32_1 = arith.constant 0 : i32
    return %c0_i32, %c0_i32_0 : i32, i32
  }
  func.func @transform_14(%arg0: i32) -> (i32, i32, i32) {
    %c0_i32 = arith.constant 0 : i32
    %c0_i32_0 = arith.constant 0 : i32
    %c0_i32_1 = arith.constant 0 : i32
    return %arg0, %c0_i32, %c0_i32_0 : i32, i32, i32
  }
}

</mosaic_0001>

<llo_original>
// kernel: tpu_custom_call.1
$region0: #{tpu_custom_call.1}
  #allocation0 [shape = 'u32[]', space=smem, size = 0x4, offset = 0x4, fixed_abs, tag = 'smem constant byte address 0x4 - core index']
  #allocation1 [shape = 'u32[144,128]{1,0:T(1,128)}', space=vmem, size = 0x12000, scoped, tag = 'internal scratch']
  %s0 = inlined_call_operand.vmem [shape: f32[2,8,32], index: 0, kind: input, shape index: {}]
  %s1 = inlined_call_operand.vmem [shape: f32[2,1,8], index: 1, kind: input, shape index: {}]
  %s2 = inlined_call_operand.vmem [shape: f32[1,32], index: 2, kind: input, shape index: {}]
  %s3 = inlined_call_operand.vmem [shape: f32[1,32], index: 3, kind: input, shape index: {}]
  %s4 = inlined_call_operand.vmem [shape: bf16[32,96], index: 4, kind: input, shape index: {}]
  %s5 = inlined_call_operand.vmem [shape: f32[1,96], index: 5, kind: input, shape index: {}]
  %s6 = inlined_call_operand.vmem [shape: bf16[4,8,32], index: 6, kind: input, shape index: {}]
  %s7 = inlined_call_operand.vmem [shape: f32[1,32], index: 7, kind: input, shape index: {}]
  %s8 = inlined_call_operand.vmem [shape: f32[1,32], index: 8, kind: input, shape index: {}]
  %s9 = inlined_call_operand.vmem [shape: f32[1,32], index: 9, kind: input, shape index: {}]
  %s10 = inlined_call_operand.vmem [shape: bf16[32,128], index: 10, kind: input, shape index: {}]
  %s11 = inlined_call_operand.vmem [shape: f32[1,128], index: 11, kind: input, shape index: {}]
  %s12 = inlined_call_operand.vmem [shape: bf16[128,32], index: 12, kind: input, shape index: {}]
  %s13 = inlined_call_operand.vmem [shape: f32[1,32], index: 13, kind: input, shape index: {}]
  %s14 = inlined_call_operand.hbm [shape: f32[2,8,32], index: 14, kind: output, shape index: {}]
  %s15 = sld [smem:[#allocation0]]
  $region66: #{tpu_custom_call.1} parent=0
    _
  %s17 = ssub.s32 1, %s15
  %s18 = scalar_select 0, %s17, %s15
  $region1: #{tpu_custom_call.1} parent=0
    #allocation2 [shape = 'u8[8192]{0}', space=vmem, size = 0x2000, scoped, tag = 'output window, operand 0, single buffered']
    #allocation3 [shape = 's32[1]{0}', space=sflag, size = 0x4, scoped, tag = 'scoped memory for tpu_custom_call.1']
    %19 = vsyncpa [#allocation3], 0
    // Predicated region
    $region2: #{tpu_custom_call.1} parent=1 // pred_check
      _
    $region3: #{tpu_custom_call.1} parent=1 // pred_check_branch
      %21 = sbr.rel (0) target = $region5
    $region4: #{tpu_custom_call.1} parent=1 // pred_region
      _
    $region5: #{tpu_custom_call.1} parent=1 // pred_fallthru
      _
    // Predicated region
    $region6: #{tpu_custom_call.1} parent=1 // pred_check
      _
    $region7: #{tpu_custom_call.1} parent=1 // pred_check_branch
      %23 = sbr.rel (0) target = $region9
    $region8: #{tpu_custom_call.1} parent=1 // pred_region
      _
    $region9: #{tpu_custom_call.1} parent=1 // pred_fallthru
      _
    // Predicated region
    $region10: #{tpu_custom_call.1} parent=1 // pred_check
      _
    $region11: #{tpu_custom_call.1} parent=1 // pred_check_branch
      %25 = sbr.rel (0) target = $region13
    $region12: #{tpu_custom_call.1} parent=1 // pred_region
      _
    $region13: #{tpu_custom_call.1} parent=1 // pred_fallthru
      _
    // Predicated region
    $region14: #{tpu_custom_call.1} parent=1 // pred_check
      _
    $region15: #{tpu_custom_call.1} parent=1 // pred_check_branch
      %27 = sbr.rel (0) target = $region17
    $region16: #{tpu_custom_call.1} parent=1 // pred_region
      _
    $region17: #{tpu_custom_call.1} parent=1 // pred_fallthru
      _
    // Predicated region
    $region18: #{tpu_custom_call.1} parent=1 // pred_check
      _
    $region19: #{tpu_custom_call.1} parent=1 // pred_check_branch
      %29 = sbr.rel (0) target = $region21
    $region20: #{tpu_custom_call.1} parent=1 // pred_region
      _
    $region21: #{tpu_custom_call.1} parent=1 // pred_fallthru
      _
    // Predicated region
    $region22: #{tpu_custom_call.1} parent=1 // pred_check
      _
    $region23: #{tpu_custom_call.1} parent=1 // pred_check_branch
      %31 = sbr.rel (0) target = $region25
    $region24: #{tpu_custom_call.1} parent=1 // pred_region
      _
    $region25: #{tpu_custom_call.1} parent=1 // pred_fallthru
      _
    // Predicated region
    $region26: #{tpu_custom_call.1} parent=1 // pred_check
      _
    $region27: #{tpu_custom_call.1} parent=1 // pred_check_branch
      %33 = sbr.rel (0) target = $region29
    $region28: #{tpu_custom_call.1} parent=1 // pred_region
      _
    $region29: #{tpu_custom_call.1} parent=1 // pred_fallthru
      _
    // Predicated region
    $region30: #{tpu_custom_call.1} parent=1 // pred_check
      _
    $region31: #{tpu_custom_call.1} parent=1 // pred_check_branch
      %35 = sbr.rel (0) target = $region33
    $region32: #{tpu_custom_call.1} parent=1 // pred_region
      _
    $region33: #{tpu_custom_call.1} parent=1 // pred_fallthru
      _
    // Predicated region
    $region34: #{tpu_custom_call.1} parent=1 // pred_check
      _
    $region35: #{tpu_custom_call.1} parent=1 // pred_check_branch
      %37 = sbr.rel (0) target = $region37
    $region36: #{tpu_custom_call.1} parent=1 // pred_region
      _
    $region37: #{tpu_custom_call.1} parent=1 // pred_fallthru
      _
    // Predicated region
    $region38: #{tpu_custom_call.1} parent=1 // pred_check
      _
    $region39: #{tpu_custom_call.1} parent=1 // pred_check_branch
      %39 = sbr.rel (0) target = $region41
    $region40: #{tpu_custom_call.1} parent=1 // pred_region
      _
    $region41: #{tpu_custom_call.1} parent=1 // pred_fallthru
      _
    // Predicated region
    $region42: #{tpu_custom_call.1} parent=1 // pred_check
      _
    $region43: #{tpu_custom_call.1} parent=1 // pred_check_branch
      %41 = sbr.rel (0) target = $region45
    $region44: #{tpu_custom_call.1} parent=1 // pred_region
      _
    $region45: #{tpu_custom_call.1} parent=1 // pred_fallthru
      _
    // Predicated region
    $region46: #{tpu_custom_call.1} parent=1 // pred_check
      _
    $region47: #{tpu_custom_call.1} parent=1 // pred_check_branch
      %43 = sbr.rel (0) target = $region49
    $region48: #{tpu_custom_call.1} parent=1 // pred_region
      _
    $region49: #{tpu_custom_call.1} parent=1 // pred_fallthru
      _
    // Predicated region
    $region50: #{tpu_custom_call.1} parent=1 // pred_check
      _
    $region51: #{tpu_custom_call.1} parent=1 // pred_check_branch
      %45 = sbr.rel (0) target = $region53
    $region52: #{tpu_custom_call.1} parent=1 // pred_region
      _
    $region53: #{tpu_custom_call.1} parent=1 // pred_fallthru
      _
    // Predicated region
    $region54: #{tpu_custom_call.1} parent=1 // pred_check
      _
    $region55: #{tpu_custom_call.1} parent=1 // pred_check_branch
      %47 = sbr.rel (0) target = $region57
    $region56: #{tpu_custom_call.1} parent=1 // pred_region
      _
    $region57: #{tpu_custom_call.1} parent=1 // pred_fallthru
      _
    %v49 = vld [vmem:[%s0] sm:$0xff]
    %v50 = vld [vmem:[%s0 + $0x8] sm:$0xff]
    %v51 = vld [vmem:[%s2] sm:$0x1]
    %v52 = vld [vmem:[%s3] sm:$0x1]
    %vm53 = vcmask 261120
    %v54 = vsel %vm53, %v49, 0.0
    %55 = vadd.xlane.f32.xlu0 %v54
    %v56 = vpop.xlane.xlu0 %55
    %v57 = vsel %vm53, %v50, 0.0
    %58 = vadd.xlane.f32.xlu0 %v57
    %v59 = vpop.xlane.xlu0 %58
    %v60 = vrcp.pop 32.0
    %v61 = vmul.f32 %v56, %v60
    %v62 = vmul.f32 %v59, %v60
    %v63 = vsub.f32 %v49, %v61
    %v64 = vsub.f32 %v50, %v62
    %v65 = vmul.f32 %v63, %v63
    %v66 = vmul.f32 %v64, %v64
    %v67 = vsel %vm53, %v65, 0.0
    %68 = vadd.xlane.f32.xlu0 %v67
    %v69 = vpop.xlane.xlu0 %68
    %v70 = vsel %vm53, %v66, 0.0
    %71 = vadd.xlane.f32.xlu0 %v70
    %v72 = vpop.xlane.xlu0 %71
    %v73 = vmul.f32 %v69, %v60
    %v74 = vmul.f32 %v72, %v60
    %v75 = vadd.f32 %v73, 1e-05
    %v76 = vadd.f32 %v74, 1e-05
    %v77 = vrsqrt.pop %v75
    %v78 = vrsqrt.pop %v76
    %v79 = vmul.f32 %v63, %v77
    %v80 = vmul.f32 %v64, %v78
    %v82 = vlaneseq
    %v83 = vshrl.u32 %v82, 7
    %v84 = vsub.s32 0, %v83
    %v85 = vrot.slane %v51, %v84
    %v87 = vmul.f32 %v79, %v85
    %v88 = vmul.f32 %v80, %v85
    %v90 = vlaneseq
    %v91 = vshrl.u32 %v90, 7
    %v92 = vsub.s32 0, %v91
    %v93 = vrot.slane %v52, %v92
    %v95 = vadd.f32 %v87, %v93
    %v96 = vadd.f32 %v88, %v93
    %v97 = vpack.c.bf16 %v96, %v95
    %v98 = vld [vmem:[%s4] sm:$0xf]
    %v99 = vld [vmem:[%s4 + $0x4] sm:$0xf]
    %v100 = vld [vmem:[%s4 + $0x8] sm:$0xf]
    %v101 = vld [vmem:[%s4 + $0xc] sm:$0xf]
    %v102 = vld [vmem:[%s5] sm:$0x1]
    %v104 = vlaneseq
    %v105 = vshrl.u32 %v104, 7
    %v106 = vsub.s32 0, %v105
    %v107 = vrot.slane %v102, %v106
    %v113 = vunpack.c.l.b16 %v98
    %v114 = vunpack.c.l.b16 %v99
    %v115 = vunpack.c.l.b16 %v100
    %v116 = vunpack.c.l.b16 %v101
    %v117 = vpack.c.b16 %v114, %v113
    %v118 = vpack.c.b16 %v116, %v115
    %v122 = vsel %vm53, %v97, 0
    %124 = vmatprep.subr.bf16.mxu0 0
    %125 = vmatpush1.bf16.msra.mxu0 %v117
    %126 = vmatprep.subr.bf16.mxu0 0
    %127 = vmatpush1.bf16.msra.mxu0 %v118
    %128 = vmatprep.subr.bf16.mxu0 0
    %129 = vmatpush1.bf16.msra.mxu0 0
    %130 = vmatprep.subr.bf16.mxu0 0
    %131 = vmatpush1.bf16.msra.mxu0 0
    %132 = vmatprep.subr.bf16.mxu0 0
    %133 = vmatpush1.bf16.msra.mxu0 0
    %134 = vmatprep.subr.bf16.mxu0 0
    %135 = vmatpush1.bf16.msra.mxu0 0
    %136 = vmatprep.subr.bf16.mxu0 0
    %137 = vmatpush1.bf16.msra.mxu0 0
    %138 = vmatprep.subr.bf16.mxu0 0
    %139 = vmatpush1.bf16.msra.mxu0 0
    %140 = vmatprep.subr.bf16.mxu0 0
    %141 = vmatpush1.bf16.msra.mxu0 0
    %142 = vmatprep.subr.bf16.mxu0 0
    %143 = vmatpush1.bf16.msra.mxu0 0
    %144 = vmatprep.subr.bf16.mxu0 0
    %145 = vmatpush1.bf16.msra.mxu0 0
    %146 = vmatprep.subr.bf16.mxu0 0
    %147 = vmatpush1.bf16.msra.mxu0 0
    %148 = vmatprep.subr.bf16.mxu0 0
    %149 = vmatpush1.bf16.msra.mxu0 0
    %150 = vmatprep.subr.bf16.mxu0 0
    %151 = vmatpush1.bf16.msra.mxu0 0
    %152 = vmatprep.subr.bf16.mxu0 0
    %153 = vmatpush1.bf16.msra.mxu0 0
    %154 = vmatprep.subr.bf16.mxu0 0
    %155 = vmatpush1.bf16.msra.mxu0 0
    %156 = vmatprep.mubr.bf16.mxu0 0
    %157 = vmatmul.mubr.bf16.gmra.mrb[0].mxu0 %v122
    %v158 = vpop.f32.mrb[0].mxu0
    %v159 = vadd.f32 %v107, %v158
    %v160 = vpop.f32.mrb[0].mxu0
    %v161 = vpop.f32.mrb[0].mxu0
    %v162 = vadd.f32 %v107, %v161
    %v163 = vpop.f32.mrb[0].mxu0
    %164 = vdwg.mxu0
    %v165 = vpack.c.bf16 %v162, %v159
    %v167 = vunpack.c.l.b16 %v165
    %v168 = vunpack.c.h.b16 %v165
    %v169 = vpack.c.b16 %v167, %v167
    %v170 = vpack.c.b16 %v168, %v168
    %171 = vrot.lane.b32.xlu0 %v169, 96
    %v172 = vpop.permute.xlu0 %171
    %vm173 = vcmask 64512
    %v175 = vsel %vm173, %v169, 0
    %v178 = vsel %vm173, %v172, 0
    %180 = vmatprep.subr.bf16.mxu0 0
    %181 = vmatpush1.bf16.xpose.msra.mxu0 %v178
    %182 = vmatprep.subr.bf16.mxu0 0
    %183 = vmatpush1.bf16.xpose.msra.mxu0 0
    %184 = vmatprep.subr.bf16.mxu0 0
    %185 = vmatpush1.bf16.xpose.msra.mxu0 0
    %186 = vmatprep.subr.bf16.mxu0 0
    %187 = vmatpush1.bf16.xpose.msra.mxu0 0
    %188 = vmatprep.subr.bf16.mxu0 0
    %189 = vmatpush1.bf16.xpose.msra.mxu0 0
    %190 = vmatprep.subr.bf16.mxu0 0
    %191 = vmatpush1.bf16.xpose.msra.mxu0 0
    %192 = vmatprep.subr.bf16.mxu0 0
    %193 = vmatpush1.bf16.xpose.msra.mxu0 0
    %194 = vmatprep.subr.bf16.mxu0 0
    %195 = vmatpush1.bf16.xpose.msra.mxu0 0
    %196 = vmatprep.subr.bf16.mxu0 0
    %197 = vmatpush1.bf16.xpose.msra.mxu0 0
    %198 = vmatprep.subr.bf16.mxu0 0
    %199 = vmatpush1.bf16.xpose.msra.mxu0 0
    %200 = vmatprep.subr.bf16.mxu0 0
    %201 = vmatpush1.bf16.xpose.msra.mxu0 0
    %202 = vmatprep.subr.bf16.mxu0 0
    %203 = vmatpush1.bf16.xpose.msra.mxu0 0
    %204 = vmatprep.subr.bf16.mxu0 0
    %205 = vmatpush1.bf16.xpose.msra.mxu0 0
    %206 = vmatprep.subr.bf16.mxu0 0
    %207 = vmatpush1.bf16.xpose.msra.mxu0 0
    %208 = vmatprep.subr.bf16.mxu0 0
    %209 = vmatpush1.bf16.xpose.msra.mxu0 0
    %210 = vmatprep.subr.bf16.mxu0 0
    %211 = vmatpush1.bf16.xpose.msra.mxu0 0
    %212 = vmatprep.mubr.bf16.mxu0 0
    %213 = vmatmul.mubr.bf16.gmra.mrb[0].mxu0 %v175
    %v214 = vpop.f32.mrb[0].mxu0
    %v215 = vadd.f32 0.0, %v214
    %v216 = vpop.f32.mrb[0].mxu0
    %v217 = vpop.f32.mrb[0].mxu0
    %v218 = vpop.f32.mrb[0].mxu0
    %219 = vdwg.mxu0
    %220 = vrot.lane.b32.xlu0 %v170, 96
    %v221 = vpop.permute.xlu0 %220
    %v223 = vsel %vm173, %v170, 0
    %v226 = vsel %vm173, %v221, 0
    %228 = vmatprep.subr.bf16.mxu0 0
    %229 = vmatpush1.bf16.xpose.msra.mxu0 %v226
    %230 = vmatprep.subr.bf16.mxu0 0
    %231 = vmatpush1.bf16.xpose.msra.mxu0 0
    %232 = vmatprep.subr.bf16.mxu0 0
    %233 = vmatpush1.bf16.xpose.msra.mxu0 0
    %234 = vmatprep.subr.bf16.mxu0 0
    %235 = vmatpush1.bf16.xpose.msra.mxu0 0
    %236 = vmatprep.subr.bf16.mxu0 0
    %237 = vmatpush1.bf16.xpose.msra.mxu0 0
    %238 = vmatprep.subr.bf16.mxu0 0
    %239 = vmatpush1.bf16.xpose.msra.mxu0 0
    %240 = vmatprep.subr.bf16.mxu0 0
    %241 = vmatpush1.bf16.xpose.msra.mxu0 0
    %242 = vmatprep.subr.bf16.mxu0 0
    %243 = vmatpush1.bf16.xpose.msra.mxu0 0
    %244 = vmatprep.subr.bf16.mxu0 0
    %245 = vmatpush1.bf16.xpose.msra.mxu0 0
    %246 = vmatprep.subr.bf16.mxu0 0
    %247 = vmatpush1.bf16.xpose.msra.mxu0 0
    %248 = vmatprep.subr.bf16.mxu0 0
    %249 = vmatpush1.bf16.xpose.msra.mxu0 0
    %250 = vmatprep.subr.bf16.mxu0 0
    %251 = vmatpush1.bf16.xpose.msra.mxu0 0
    %252 = vmatprep.subr.bf16.mxu0 0
    %253 = vmatpush1.bf16.xpose.msra.mxu0 0
    %254 = vmatprep.subr.bf16.mxu0 0
    %255 = vmatpush1.bf16.xpose.msra.mxu0 0
    %256 = vmatprep.subr.bf16.mxu0 0
    %257 = vmatpush1.bf16.xpose.msra.mxu0 0
    %258 = vmatprep.subr.bf16.mxu0 0
    %259 = vmatpush1.bf16.xpose.msra.mxu0 0
    %260 = vmatprep.mubr.bf16.mxu0 0
    %261 = vmatmul.mubr.bf16.gmra.mrb[0].mxu0 %v223
    %v262 = vpop.f32.mrb[0].mxu0
    %v263 = vadd.f32 0.0, %v262
    %v264 = vpop.f32.mrb[0].mxu0
    %v265 = vpop.f32.mrb[0].mxu0
    %v266 = vpop.f32.mrb[0].mxu0
    %267 = vdwg.mxu0
    %v268 = vsel %vm173, %v215, -inf
    %269 = vmax.xlane.f32.xlu0 %v268
    %v270 = vpop.xlane.xlu0 %269
    %v271 = vsel %vm173, %v263, -inf
    %272 = vmax.xlane.f32.xlu0 %v271
    %v273 = vpop.xlane.xlu0 %272
    %v274 = vsub.f32 %v215, %v270
    %v275 = vsub.f32 %v263, %v273
    %v276 = vmul.f32 %v274, 1.442695
    %v277 = vpow.pop %v276
    %v278 = vmul.f32 %v275, 1.442695
    %v279 = vpow.pop %v278
    %v280 = vsel %vm173, %v277, 0.0
    %281 = vadd.xlane.f32.xlu0 %v280
    %v282 = vpop.xlane.xlu0 %281
    %v283 = vsel %vm173, %v279, 0.0
    %284 = vadd.xlane.f32.xlu0 %v283
    %v285 = vpop.xlane.xlu0 %284
    %v286 = vrcp.pop %v282
    %v287 = vrcp.pop %v285
    %v288 = vmul.f32 %v277, %v286
    %v289 = vmul.f32 %v279, %v287
    %v290 = vpack.c.bf16 %v288, %v288
    %v291 = vpack.c.bf16 %v289, %v289
    %292 = vrot.lane.b32.xlu0 %v169, 64
    %v293 = vpop.permute.xlu0 %292
    %v295 = vsel %vm173, %v290, 0
    %vm297 = vcmask 1043456
    %v299 = vsel %vm297, %v293, 0
    %301 = vmatprep.subr.bf16.mxu0 0
    %302 = vmatpush1.bf16.msra.mxu0 %v299
    %303 = vmatprep.subr.bf16.mxu0 0
    %304 = vmatpush1.bf16.msra.mxu0 0
    %305 = vmatprep.subr.bf16.mxu0 0
    %306 = vmatpush1.bf16.msra.mxu0 0
    %307 = vmatprep.subr.bf16.mxu0 0
    %308 = vmatpush1.bf16.msra.mxu0 0
    %309 = vmatprep.subr.bf16.mxu0 0
    %310 = vmatpush1.bf16.msra.mxu0 0
    %311 = vmatprep.subr.bf16.mxu0 0
    %312 = vmatpush1.bf16.msra.mxu0 0
    %313 = vmatprep.subr.bf16.mxu0 0
    %314 = vmatpush1.bf16.msra.mxu0 0
    %315 = vmatprep.subr.bf16.mxu0 0
    %316 = vmatpush1.bf16.msra.mxu0 0
    %317 = vmatprep.subr.bf16.mxu0 0
    %318 = vmatpush1.bf16.msra.mxu0 0
    %319 = vmatprep.subr.bf16.mxu0 0
    %320 = vmatpush1.bf16.msra.mxu0 0
    %321 = vmatprep.subr.bf16.mxu0 0
    %322 = vmatpush1.bf16.msra.mxu0 0
    %323 = vmatprep.subr.bf16.mxu0 0
    %324 = vmatpush1.bf16.msra.mxu0 0
    %325 = vmatprep.subr.bf16.mxu0 0
    %326 = vmatpush1.bf16.msra.mxu0 0
    %327 = vmatprep.subr.bf16.mxu0 0
    %328 = vmatpush1.bf16.msra.mxu0 0
    %329 = vmatprep.subr.bf16.mxu0 0
    %330 = vmatpush1.bf16.msra.mxu0 0
    %331 = vmatprep.subr.bf16.mxu0 0
    %332 = vmatpush1.bf16.msra.mxu0 0
    %333 = vmatprep.mubr.bf16.mxu0 0
    %334 = vmatmul.mubr.bf16.gmra.mrb[0].mxu0 %v295
    %v335 = vpop.f32.mrb[0].mxu0
    %v336 = vadd.f32 0.0, %v335
    %v337 = vpop.f32.mrb[0].mxu0
    %v338 = vpop.f32.mrb[0].mxu0
    %v339 = vpop.f32.mrb[0].mxu0
    %340 = vdwg.mxu0
    %341 = vrot.lane.b32.xlu0 %v170, 64
    %v342 = vpop.permute.xlu0 %341
    %v344 = vsel %vm173, %v291, 0
    %v347 = vsel %vm297, %v342, 0
    %349 = vmatprep.subr.bf16.mxu0 0
    %350 = vmatpush1.bf16.msra.mxu0 %v347
    %351 = vmatprep.subr.bf16.mxu0 0
    %352 = vmatpush1.bf16.msra.mxu0 0
    %353 = vmatprep.subr.bf16.mxu0 0
    %354 = vmatpush1.bf16.msra.mxu0 0
    %355 = vmatprep.subr.bf16.mxu0 0
    %356 = vmatpush1.bf16.msra.mxu0 0
    %357 = vmatprep.subr.bf16.mxu0 0
    %358 = vmatpush1.bf16.msra.mxu0 0
    %359 = vmatprep.subr.bf16.mxu0 0
    %360 = vmatpush1.bf16.msra.mxu0 0
    %361 = vmatprep.subr.bf16.mxu0 0
    %362 = vmatpush1.bf16.msra.mxu0 0
    %363 = vmatprep.subr.bf16.mxu0 0
    %364 = vmatpush1.bf16.msra.mxu0 0
    %365 = vmatprep.subr.bf16.mxu0 0
    %366 = vmatpush1.bf16.msra.mxu0 0
    %367 = vmatprep.subr.bf16.mxu0 0
    %368 = vmatpush1.bf16.msra.mxu0 0
    %369 = vmatprep.subr.bf16.mxu0 0
    %370 = vmatpush1.bf16.msra.mxu0 0
    %371 = vmatprep.subr.bf16.mxu0 0
    %372 = vmatpush1.bf16.msra.mxu0 0
    %373 = vmatprep.subr.bf16.mxu0 0
    %374 = vmatpush1.bf16.msra.mxu0 0
    %375 = vmatprep.subr.bf16.mxu0 0
    %376 = vmatpush1.bf16.msra.mxu0 0
    %377 = vmatprep.subr.bf16.mxu0 0
    %378 = vmatpush1.bf16.msra.mxu0 0
    %379 = vmatprep.subr.bf16.mxu0 0
    %380 = vmatpush1.bf16.msra.mxu0 0
    %381 = vmatprep.mubr.bf16.mxu0 0
    %382 = vmatmul.mubr.bf16.gmra.mrb[0].mxu0 %v344
    %v383 = vpop.f32.mrb[0].mxu0
    %v384 = vadd.f32 0.0, %v383
    %v385 = vpop.f32.mrb[0].mxu0
    %v386 = vpop.f32.mrb[0].mxu0
    %v387 = vpop.f32.mrb[0].mxu0
    %388 = vdwg.mxu0
    %v389 = vpack.c.bf16 %v384, %v336
    %v390 = vld [vmem:[%s6] sm:$0xf]
    %391 = vrot.lane.b32.xlu0 %v169, 120
    %v392 = vpop.permute.xlu0 %391
    %393 = vrot.lane.b32.xlu0 %v169, 88
    %v394 = vpop.permute.xlu0 %393
    %v396 = vsel %vm173, %v392, 0
    %v399 = vsel %vm173, %v394, 0
    %401 = vmatprep.subr.bf16.mxu0 0
    %402 = vmatpush1.bf16.xpose.msra.mxu0 %v399
    %403 = vmatprep.subr.bf16.mxu0 0
    %404 = vmatpush1.bf16.xpose.msra.mxu0 0
    %405 = vmatprep.subr.bf16.mxu0 0
    %406 = vmatpush1.bf16.xpose.msra.mxu0 0
    %407 = vmatprep.subr.bf16.mxu0 0
    %408 = vmatpush1.bf16.xpose.msra.mxu0 0
    %409 = vmatprep.subr.bf16.mxu0 0
    %410 = vmatpush1.bf16.xpose.msra.mxu0 0
    %411 = vmatprep.subr.bf16.mxu0 0
    %412 = vmatpush1.bf16.xpose.msra.mxu0 0
    %413 = vmatprep.subr.bf16.mxu0 0
    %414 = vmatpush1.bf16.xpose.msra.mxu0 0
    %415 = vmatprep.subr.bf16.mxu0 0
    %416 = vmatpush1.bf16.xpose.msra.mxu0 0
    %417 = vmatprep.subr.bf16.mxu0 0
    %418 = vmatpush1.bf16.xpose.msra.mxu0 0
    %419 = vmatprep.subr.bf16.mxu0 0
    %420 = vmatpush1.bf16.xpose.msra.mxu0 0
    %421 = vmatprep.subr.bf16.mxu0 0
    %422 = vmatpush1.bf16.xpose.msra.mxu0 0
    %423 = vmatprep.subr.bf16.mxu0 0
    %424 = vmatpush1.bf16.xpose.msra.mxu0 0
    %425 = vmatprep.subr.bf16.mxu0 0
    %426 = vmatpush1.bf16.xpose.msra.mxu0 0
    %427 = vmatprep.subr.bf16.mxu0 0
    %428 = vmatpush1.bf16.xpose.msra.mxu0 0
    %429 = vmatprep.subr.bf16.mxu0 0
    %430 = vmatpush1.bf16.xpose.msra.mxu0 0
    %431 = vmatprep.subr.bf16.mxu0 0
    %432 = vmatpush1.bf16.xpose.msra.mxu0 0
    %433 = vmatprep.mubr.bf16.mxu0 0
    %434 = vmatmul.mubr.bf16.gmra.mrb[0].mxu0 %v396
    %v435 = vpop.f32.mrb[0].mxu0
    %v436 = vadd.f32 0.0, %v435
    %v437 = vpop.f32.mrb[0].mxu0
    %v438 = vpop.f32.mrb[0].mxu0
    %v439 = vpop.f32.mrb[0].mxu0
    %440 = vdwg.mxu0
    %441 = vrot.lane.b32.xlu0 %v170, 120
    %v442 = vpop.permute.xlu0 %441
    %443 = vrot.lane.b32.xlu0 %v170, 88
    %v444 = vpop.permute.xlu0 %443
    %v446 = vsel %vm173, %v442, 0
    %v449 = vsel %vm173, %v444, 0
    %451 = vmatprep.subr.bf16.mxu0 0
    %452 = vmatpush1.bf16.xpose.msra.mxu0 %v449
    %453 = vmatprep.subr.bf16.mxu0 0
    %454 = vmatpush1.bf16.xpose.msra.mxu0 0
    %455 = vmatprep.subr.bf16.mxu0 0
    %456 = vmatpush1.bf16.xpose.msra.mxu0 0
    %457 = vmatprep.subr.bf16.mxu0 0
    %458 = vmatpush1.bf16.xpose.msra.mxu0 0
    %459 = vmatprep.subr.bf16.mxu0 0
    %460 = vmatpush1.bf16.xpose.msra.mxu0 0
    %461 = vmatprep.subr.bf16.mxu0 0
    %462 = vmatpush1.bf16.xpose.msra.mxu0 0
    %463 = vmatprep.subr.bf16.mxu0 0
    %464 = vmatpush1.bf16.xpose.msra.mxu0 0
    %465 = vmatprep.subr.bf16.mxu0 0
    %466 = vmatpush1.bf16.xpose.msra.mxu0 0
    %467 = vmatprep.subr.bf16.mxu0 0
    %468 = vmatpush1.bf16.xpose.msra.mxu0 0
    %469 = vmatprep.subr.bf16.mxu0 0
    %470 = vmatpush1.bf16.xpose.msra.mxu0 0
    %471 = vmatprep.subr.bf16.mxu0 0
    %472 = vmatpush1.bf16.xpose.msra.mxu0 0
    %473 = vmatprep.subr.bf16.mxu0 0
    %474 = vmatpush1.bf16.xpose.msra.mxu0 0
    %475 = vmatprep.subr.bf16.mxu0 0
    %476 = vmatpush1.bf16.xpose.msra.mxu0 0
    %477 = vmatprep.subr.bf16.mxu0 0
    %478 = vmatpush1.bf16.xpose.msra.mxu0 0
    %479 = vmatprep.subr.bf16.mxu0 0
    %480 = vmatpush1.bf16.xpose.msra.mxu0 0
    %481 = vmatprep.subr.bf16.mxu0 0
    %482 = vmatpush1.bf16.xpose.msra.mxu0 0
    %483 = vmatprep.mubr.bf16.mxu0 0
    %484 = vmatmul.mubr.bf16.gmra.mrb[0].mxu0 %v446
    %v485 = vpop.f32.mrb[0].mxu0
    %v486 = vadd.f32 0.0, %v485
    %v487 = vpop.f32.mrb[0].mxu0
    %v488 = vpop.f32.mrb[0].mxu0
    %v489 = vpop.f32.mrb[0].mxu0
    %490 = vdwg.mxu0
    %v491 = vsel %vm173, %v436, -inf
    %492 = vmax.xlane.f32.xlu0 %v491
    %v493 = vpop.xlane.xlu0 %492
    %v494 = vsel %vm173, %v486, -inf
    %495 = vmax.xlane.f32.xlu0 %v494
    %v496 = vpop.xlane.xlu0 %495
    %v497 = vsub.f32 %v436, %v493
    %v498 = vsub.f32 %v486, %v496
    %v499 = vmul.f32 %v497, 1.442695
    %v500 = vpow.pop %v499
    %v501 = vmul.f32 %v498, 1.442695
    %v502 = vpow.pop %v501
    %v503 = vsel %vm173, %v500, 0.0
    %504 = vadd.xlane.f32.xlu0 %v503
    %v505 = vpop.xlane.xlu0 %504
    %v506 = vsel %vm173, %v502, 0.0
    %507 = vadd.xlane.f32.xlu0 %v506
    %v508 = vpop.xlane.xlu0 %507
    %v509 = vrcp.pop %v505
    %v510 = vrcp.pop %v508
    %v511 = vmul.f32 %v500, %v509
    %v512 = vmul.f32 %v502, %v510
    %v513 = vpack.c.bf16 %v511, %v511
    %v514 = vpack.c.bf16 %v512, %v512
    %515 = vrot.lane.b32.xlu0 %v169, 56
    %v516 = vpop.permute.xlu0 %515
    %v518 = vsel %vm173, %v513, 0
    %v521 = vsel %vm297, %v516, 0
    %523 = vmatprep.subr.bf16.mxu0 0
    %524 = vmatpush1.bf16.msra.mxu0 %v521
    %525 = vmatprep.subr.bf16.mxu0 0
    %526 = vmatpush1.bf16.msra.mxu0 0
    %527 = vmatprep.subr.bf16.mxu0 0
    %528 = vmatpush1.bf16.msra.mxu0 0
    %529 = vmatprep.subr.bf16.mxu0 0
    %530 = vmatpush1.bf16.msra.mxu0 0
    %531 = vmatprep.subr.bf16.mxu0 0
    %532 = vmatpush1.bf16.msra.mxu0 0
    %533 = vmatprep.subr.bf16.mxu0 0
    %534 = vmatpush1.bf16.msra.mxu0 0
    %535 = vmatprep.subr.bf16.mxu0 0
    %536 = vmatpush1.bf16.msra.mxu0 0
    %537 = vmatprep.subr.bf16.mxu0 0
    %538 = vmatpush1.bf16.msra.mxu0 0
    %539 = vmatprep.subr.bf16.mxu0 0
    %540 = vmatpush1.bf16.msra.mxu0 0
    %541 = vmatprep.subr.bf16.mxu0 0
    %542 = vmatpush1.bf16.msra.mxu0 0
    %543 = vmatprep.subr.bf16.mxu0 0
    %544 = vmatpush1.bf16.msra.mxu0 0
    %545 = vmatprep.subr.bf16.mxu0 0
    %546 = vmatpush1.bf16.msra.mxu0 0
    %547 = vmatprep.subr.bf16.mxu0 0
    %548 = vmatpush1.bf16.msra.mxu0 0
    %549 = vmatprep.subr.bf16.mxu0 0
    %550 = vmatpush1.bf16.msra.mxu0 0
    %551 = vmatprep.subr.bf16.mxu0 0
    %552 = vmatpush1.bf16.msra.mxu0 0
    %553 = vmatprep.subr.bf16.mxu0 0
    %554 = vmatpush1.bf16.msra.mxu0 0
    %555 = vmatprep.mubr.bf16.mxu0 0
    %556 = vmatmul.mubr.bf16.gmra.mrb[0].mxu0 %v518
    %v557 = vpop.f32.mrb[0].mxu0
    %v558 = vadd.f32 0.0, %v557
    %v559 = vpop.f32.mrb[0].mxu0
    %v560 = vpop.f32.mrb[0].mxu0
    %v561 = vpop.f32.mrb[0].mxu0
    %562 = vdwg.mxu0
    %563 = vrot.lane.b32.xlu0 %v170, 56
    %v564 = vpop.permute.xlu0 %563
    %v566 = vsel %vm173, %v514, 0
    %v569 = vsel %vm297, %v564, 0
    %571 = vmatprep.subr.bf16.mxu0 0
    %572 = vmatpush1.bf16.msra.mxu0 %v569
    %573 = vmatprep.subr.bf16.mxu0 0
    %574 = vmatpush1.bf16.msra.mxu0 0
    %575 = vmatprep.subr.bf16.mxu0 0
    %576 = vmatpush1.bf16.msra.mxu0 0
    %577 = vmatprep.subr.bf16.mxu0 0
    %578 = vmatpush1.bf16.msra.mxu0 0
    %579 = vmatprep.subr.bf16.mxu0 0
    %580 = vmatpush1.bf16.msra.mxu0 0
    %581 = vmatprep.subr.bf16.mxu0 0
    %582 = vmatpush1.bf16.msra.mxu0 0
    %583 = vmatprep.subr.bf16.mxu0 0
    %584 = vmatpush1.bf16.msra.mxu0 0
    %585 = vmatprep.subr.bf16.mxu0 0
    %586 = vmatpush1.bf16.msra.mxu0 0
    %587 = vmatprep.subr.bf16.mxu0 0
    %588 = vmatpush1.bf16.msra.mxu0 0
    %589 = vmatprep.subr.bf16.mxu0 0
    %590 = vmatpush1.bf16.msra.mxu0 0
    %591 = vmatprep.subr.bf16.mxu0 0
    %592 = vmatpush1.bf16.msra.mxu0 0
    %593 = vmatprep.subr.bf16.mxu0 0
    %594 = vmatpush1.bf16.msra.mxu0 0
    %595 = vmatprep.subr.bf16.mxu0 0
    %596 = vmatpush1.bf16.msra.mxu0 0
    %597 = vmatprep.subr.bf16.mxu0 0
    %598 = vmatpush1.bf16.msra.mxu0 0
    %599 = vmatprep.subr.bf16.mxu0 0
    %600 = vmatpush1.bf16.msra.mxu0 0
    %601 = vmatprep.subr.bf16.mxu0 0
    %602 = vmatpush1.bf16.msra.mxu0 0
    %603 = vmatprep.mubr.bf16.mxu0 0
    %604 = vmatmul.mubr.bf16.gmra.mrb[0].mxu0 %v566
    %v605 = vpop.f32.mrb[0].mxu0
    %v606 = vadd.f32 0.0, %v605
    %v607 = vpop.f32.mrb[0].mxu0
    %v608 = vpop.f32.mrb[0].mxu0
    %v609 = vpop.f32.mrb[0].mxu0
    %610 = vdwg.mxu0
    %v611 = vpack.c.bf16 %v606, %v558
    %s612 = scalar_lea.vmem %s6, 4
    %v613 = vld [vmem:[%s612] sm:$0xf]
    %v615 = vsel %vm173, %v611, 0
    %v618 = vsel %vm297, %v613, 0
    %620 = vmatprep.subr.bf16.mxu0 0
    %621 = vmatpush1.bf16.msra.mxu0 %v618
    %622 = vmatprep.subr.bf16.mxu0 0
    %623 = vmatpush1.bf16.msra.mxu0 0
    %624 = vmatprep.subr.bf16.mxu0 0
    %625 = vmatpush1.bf16.msra.mxu0 0
    %626 = vmatprep.subr.bf16.mxu0 0
    %627 = vmatpush1.bf16.msra.mxu0 0
    %628 = vmatprep.subr.bf16.mxu0 0
    %629 = vmatpush1.bf16.msra.mxu0 0
    %630 = vmatprep.subr.bf16.mxu0 0
    %631 = vmatpush1.bf16.msra.mxu0 0
    %632 = vmatprep.subr.bf16.mxu0 0
    %633 = vmatpush1.bf16.msra.mxu0 0
    %634 = vmatprep.subr.bf16.mxu0 0
    %635 = vmatpush1.bf16.msra.mxu0 0
    %636 = vmatprep.subr.bf16.mxu0 0
    %637 = vmatpush1.bf16.msra.mxu0 0
    %638 = vmatprep.subr.bf16.mxu0 0
    %639 = vmatpush1.bf16.msra.mxu0 0
    %640 = vmatprep.subr.bf16.mxu0 0
    %641 = vmatpush1.bf16.msra.mxu0 0
    %642 = vmatprep.subr.bf16.mxu0 0
    %643 = vmatpush1.bf16.msra.mxu0 0
    %644 = vmatprep.subr.bf16.mxu0 0
    %645 = vmatpush1.bf16.msra.mxu0 0
    %646 = vmatprep.subr.bf16.mxu0 0
    %647 = vmatpush1.bf16.msra.mxu0 0
    %648 = vmatprep.subr.bf16.mxu0 0
    %649 = vmatpush1.bf16.msra.mxu0 0
    %650 = vmatprep.subr.bf16.mxu0 0
    %651 = vmatpush1.bf16.msra.mxu0 0
    %652 = vmatprep.mubr.bf16.mxu0 0
    %653 = vmatmul.mubr.bf16.gmra.mrb[0].mxu0 %v615
    %v654 = vpop.f32.mrb[0].mxu0
    %v655 = vadd.f32 0.0, %v654
    %v656 = vpop.f32.mrb[0].mxu0
    %v657 = vpop.f32.mrb[0].mxu0
    %v658 = vadd.f32 0.0, %v657
    %v659 = vpop.f32.mrb[0].mxu0
    %660 = vdwg.mxu0
    %v662 = vsel %vm173, %v389, 0
    %v665 = vsel %vm297, %v390, 0
    %667 = vmatprep.subr.bf16.mxu0 0
    %668 = vmatpush1.bf16.msra.mxu0 %v665
    %669 = vmatprep.subr.bf16.mxu0 0
    %670 = vmatpush1.bf16.msra.mxu0 0
    %671 = vmatprep.subr.bf16.mxu0 0
    %672 = vmatpush1.bf16.msra.mxu0 0
    %673 = vmatprep.subr.bf16.mxu0 0
    %674 = vmatpush1.bf16.msra.mxu0 0
    %675 = vmatprep.subr.bf16.mxu0 0
    %676 = vmatpush1.bf16.msra.mxu0 0
    %677 = vmatprep.subr.bf16.mxu0 0
    %678 = vmatpush1.bf16.msra.mxu0 0
    %679 = vmatprep.subr.bf16.mxu0 0
    %680 = vmatpush1.bf16.msra.mxu0 0
    %681 = vmatprep.subr.bf16.mxu0 0
    %682 = vmatpush1.bf16.msra.mxu0 0
    %683 = vmatprep.subr.bf16.mxu0 0
    %684 = vmatpush1.bf16.msra.mxu0 0
    %685 = vmatprep.subr.bf16.mxu0 0
    %686 = vmatpush1.bf16.msra.mxu0 0
    %687 = vmatprep.subr.bf16.mxu0 0
    %688 = vmatpush1.bf16.msra.mxu0 0
    %689 = vmatprep.subr.bf16.mxu0 0
    %690 = vmatpush1.bf16.msra.mxu0 0
    %691 = vmatprep.subr.bf16.mxu0 0
    %692 = vmatpush1.bf16.msra.mxu0 0
    %693 = vmatprep.subr.bf16.mxu0 0
    %694 = vmatpush1.bf16.msra.mxu0 0
    %695 = vmatprep.subr.bf16.mxu0 0
    %696 = vmatpush1.bf16.msra.mxu0 0
    %697 = vmatprep.subr.bf16.mxu0 0
    %698 = vmatpush1.bf16.msra.mxu0 0
    %699 = vmatprep.mubr.bf16.mxu0 0
    %700 = vmatmul.mubr.bf16.gmra.mrb[0].mxu0 %v662
    %v701 = vpop.f32.mrb[0].mxu0
    %v702 = vadd.f32 %v655, %v701
    %v703 = vpop.f32.mrb[0].mxu0
    %v704 = vpop.f32.mrb[0].mxu0
    %v705 = vadd.f32 %v658, %v704
    %v706 = vpop.f32.mrb[0].mxu0
    %707 = vdwg.mxu0
    %708 = vrot.lane.b32.xlu0 %v169, 112
    %v709 = vpop.permute.xlu0 %708
    %710 = vrot.lane.b32.xlu0 %v169, 80
    %v711 = vpop.permute.xlu0 %710
    %v713 = vsel %vm173, %v709, 0
    %v716 = vsel %vm173, %v711, 0
    %718 = vmatprep.subr.bf16.mxu0 0
    %719 = vmatpush1.bf16.xpose.msra.mxu0 %v716
    %720 = vmatprep.subr.bf16.mxu0 0
    %721 = vmatpush1.bf16.xpose.msra.mxu0 0
    %722 = vmatprep.subr.bf16.mxu0 0
    %723 = vmatpush1.bf16.xpose.msra.mxu0 0
    %724 = vmatprep.subr.bf16.mxu0 0
    %725 = vmatpush1.bf16.xpose.msra.mxu0 0
    %726 = vmatprep.subr.bf16.mxu0 0
    %727 = vmatpush1.bf16.xpose.msra.mxu0 0
    %728 = vmatprep.subr.bf16.mxu0 0
    %729 = vmatpush1.bf16.xpose.msra.mxu0 0
    %730 = vmatprep.subr.bf16.mxu0 0
    %731 = vmatpush1.bf16.xpose.msra.mxu0 0
    %732 = vmatprep.subr.bf16.mxu0 0
    %733 = vmatpush1.bf16.xpose.msra.mxu0 0
    %734 = vmatprep.subr.bf16.mxu0 0
    %735 = vmatpush1.bf16.xpose.msra.mxu0 0
    %736 = vmatprep.subr.bf16.mxu0 0
    %737 = vmatpush1.bf16.xpose.msra.mxu0 0
    %738 = vmatprep.subr.bf16.mxu0 0
    %739 = vmatpush1.bf16.xpose.msra.mxu0 0
    %740 = vmatprep.subr.bf16.mxu0 0
    %741 = vmatpush1.bf16.xpose.msra.mxu0 0
    %742 = vmatprep.subr.bf16.mxu0 0
    %743 = vmatpush1.bf16.xpose.msra.mxu0 0
    %744 = vmatprep.subr.bf16.mxu0 0
    %745 = vmatpush1.bf16.xpose.msra.mxu0 0
    %746 = vmatprep.subr.bf16.mxu0 0
    %747 = vmatpush1.bf16.xpose.msra.mxu0 0
    %748 = vmatprep.subr.bf16.mxu0 0
    %749 = vmatpush1.bf16.xpose.msra.mxu0 0
    %750 = vmatprep.mubr.bf16.mxu0 0
    %751 = vmatmul.mubr.bf16.gmra.mrb[0].mxu0 %v713
    %v752 = vpop.f32.mrb[0].mxu0
    %v753 = vadd.f32 0.0, %v752
    %v754 = vpop.f32.mrb[0].mxu0
    %v755 = vpop.f32.mrb[0].mxu0
    %v756 = vpop.f32.mrb[0].mxu0
    %757 = vdwg.mxu0
    %758 = vrot.lane.b32.xlu0 %v170, 112
    %v759 = vpop.permute.xlu0 %758
    %760 = vrot.lane.b32.xlu0 %v170, 80
    %v761 = vpop.permute.xlu0 %760
    %v763 = vsel %vm173, %v759, 0
    %v766 = vsel %vm173, %v761, 0
    %768 = vmatprep.subr.bf16.mxu0 0
    %769 = vmatpush1.bf16.xpose.msra.mxu0 %v766
    %770 = vmatprep.subr.bf16.mxu0 0
    %771 = vmatpush1.bf16.xpose.msra.mxu0 0
    %772 = vmatprep.subr.bf16.mxu0 0
    %773 = vmatpush1.bf16.xpose.msra.mxu0 0
    %774 = vmatprep.subr.bf16.mxu0 0
    %775 = vmatpush1.bf16.xpose.msra.mxu0 0
    %776 = vmatprep.subr.bf16.mxu0 0
    %777 = vmatpush1.bf16.xpose.msra.mxu0 0
    %778 = vmatprep.subr.bf16.mxu0 0
    %779 = vmatpush1.bf16.xpose.msra.mxu0 0
    %780 = vmatprep.subr.bf16.mxu0 0
    %781 = vmatpush1.bf16.xpose.msra.mxu0 0
    %782 = vmatprep.subr.bf16.mxu0 0
    %783 = vmatpush1.bf16.xpose.msra.mxu0 0
    %784 = vmatprep.subr.bf16.mxu0 0
    %785 = vmatpush1.bf16.xpose.msra.mxu0 0
    %786 = vmatprep.subr.bf16.mxu0 0
    %787 = vmatpush1.bf16.xpose.msra.mxu0 0
    %788 = vmatprep.subr.bf16.mxu0 0
    %789 = vmatpush1.bf16.xpose.msra.mxu0 0
    %790 = vmatprep.subr.bf16.mxu0 0
    %791 = vmatpush1.bf16.xpose.msra.mxu0 0
    %792 = vmatprep.subr.bf16.mxu0 0
    %793 = vmatpush1.bf16.xpose.msra.mxu0 0
    %794 = vmatprep.subr.bf16.mxu0 0
    %795 = vmatpush1.bf16.xpose.msra.mxu0 0
    %796 = vmatprep.subr.bf16.mxu0 0
    %797 = vmatpush1.bf16.xpose.msra.mxu0 0
    %798 = vmatprep.subr.bf16.mxu0 0
    %799 = vmatpush1.bf16.xpose.msra.mxu0 0
    %800 = vmatprep.mubr.bf16.mxu0 0
    %801 = vmatmul.mubr.bf16.gmra.mrb[0].mxu0 %v763
    %v802 = vpop.f32.mrb[0].mxu0
    %v803 = vadd.f32 0.0, %v802
    %v804 = vpop.f32.mrb[0].mxu0
    %v805 = vpop.f32.mrb[0].mxu0
    %v806 = vpop.f32.mrb[0].mxu0
    %807 = vdwg.mxu0
    %v808 = vsel %vm173, %v753, -inf
    %809 = vmax.xlane.f32.xlu0 %v808
    %v810 = vpop.xlane.xlu0 %809
    %v811 = vsel %vm173, %v803, -inf
    %812 = vmax.xlane.f32.xlu0 %v811
    %v813 = vpop.xlane.xlu0 %812
    %v814 = vsub.f32 %v753, %v810
    %v815 = vsub.f32 %v803, %v813
    %v816 = vmul.f32 %v814, 1.442695
    %v817 = vpow.pop %v816
    %v818 = vmul.f32 %v815, 1.442695
    %v819 = vpow.pop %v818
    %v820 = vsel %vm173, %v817, 0.0
    %821 = vadd.xlane.f32.xlu0 %v820
    %v822 = vpop.xlane.xlu0 %821
    %v823 = vsel %vm173, %v819, 0.0
    %824 = vadd.xlane.f32.xlu0 %v823
    %v825 = vpop.xlane.xlu0 %824
    %v826 = vrcp.pop %v822
    %v827 = vrcp.pop %v825
    %v828 = vmul.f32 %v817, %v826
    %v829 = vmul.f32 %v819, %v827
    %v830 = vpack.c.bf16 %v828, %v828
    %v831 = vpack.c.bf16 %v829, %v829
    %832 = vrot.lane.b32.xlu0 %v169, 48
    %v833 = vpop.permute.xlu0 %832
    %v835 = vsel %vm173, %v830, 0
    %v838 = vsel %vm297, %v833, 0
    %840 = vmatprep.subr.bf16.mxu0 0
    %841 = vmatpush1.bf16.msra.mxu0 %v838
    %842 = vmatprep.subr.bf16.mxu0 0
    %843 = vmatpush1.bf16.msra.mxu0 0
    %844 = vmatprep.subr.bf16.mxu0 0
    %845 = vmatpush1.bf16.msra.mxu0 0
    %846 = vmatprep.subr.bf16.mxu0 0
    %847 = vmatpush1.bf16.msra.mxu0 0
    %848 = vmatprep.subr.bf16.mxu0 0
    %849 = vmatpush1.bf16.msra.mxu0 0
    %850 = vmatprep.subr.bf16.mxu0 0
    %851 = vmatpush1.bf16.msra.mxu0 0
    %852 = vmatprep.subr.bf16.mxu0 0
    %853 = vmatpush1.bf16.msra.mxu0 0
    %854 = vmatprep.subr.bf16.mxu0 0
    %855 = vmatpush1.bf16.msra.mxu0 0
    %856 = vmatprep.subr.bf16.mxu0 0
    %857 = vmatpush1.bf16.msra.mxu0 0
    %858 = vmatprep.subr.bf16.mxu0 0
    %859 = vmatpush1.bf16.msra.mxu0 0
    %860 = vmatprep.subr.bf16.mxu0 0
    %861 = vmatpush1.bf16.msra.mxu0 0
    %862 = vmatprep.subr.bf16.mxu0 0
    %863 = vmatpush1.bf16.msra.mxu0 0
    %864 = vmatprep.subr.bf16.mxu0 0
    %865 = vmatpush1.bf16.msra.mxu0 0
    %866 = vmatprep.subr.bf16.mxu0 0
    %867 = vmatpush1.bf16.msra.mxu0 0
    %868 = vmatprep.subr.bf16.mxu0 0
    %869 = vmatpush1.bf16.msra.mxu0 0
    %870 = vmatprep.subr.bf16.mxu0 0
    %871 = vmatpush1.bf16.msra.mxu0 0
    %872 = vmatprep.mubr.bf16.mxu0 0
    %873 = vmatmul.mubr.bf16.gmra.mrb[0].mxu0 %v835
    %v874 = vpop.f32.mrb[0].mxu0
    %v875 = vadd.f32 0.0, %v874
    %v876 = vpop.f32.mrb[0].mxu0
    %v877 = vpop.f32.mrb[0].mxu0
    %v878 = vpop.f32.mrb[0].mxu0
    %879 = vdwg.mxu0
    %880 = vrot.lane.b32.xlu0 %v170, 48
    %v881 = vpop.permute.xlu0 %880
    %v883 = vsel %vm173, %v831, 0
    %v886 = vsel %vm297, %v881, 0
    %888 = vmatprep.subr.bf16.mxu0 0
    %889 = vmatpush1.bf16.msra.mxu0 %v886
    %890 = vmatprep.subr.bf16.mxu0 0
    %891 = vmatpush1.bf16.msra.mxu0 0
    %892 = vmatprep.subr.bf16.mxu0 0
    %893 = vmatpush1.bf16.msra.mxu0 0
    %894 = vmatprep.subr.bf16.mxu0 0
    %895 = vmatpush1.bf16.msra.mxu0 0
    %896 = vmatprep.subr.bf16.mxu0 0
    %897 = vmatpush1.bf16.msra.mxu0 0
    %898 = vmatprep.subr.bf16.mxu0 0
    %899 = vmatpush1.bf16.msra.mxu0 0
    %900 = vmatprep.subr.bf16.mxu0 0
    %901 = vmatpush1.bf16.msra.mxu0 0
    %902 = vmatprep.subr.bf16.mxu0 0
    %903 = vmatpush1.bf16.msra.mxu0 0
    %904 = vmatprep.subr.bf16.mxu0 0
    %905 = vmatpush1.bf16.msra.mxu0 0
    %906 = vmatprep.subr.bf16.mxu0 0
    %907 = vmatpush1.bf16.msra.mxu0 0
    %908 = vmatprep.subr.bf16.mxu0 0
    %909 = vmatpush1.bf16.msra.mxu0 0
    %910 = vmatprep.subr.bf16.mxu0 0
    %911 = vmatpush1.bf16.msra.mxu0 0
    %912 = vmatprep.subr.bf16.mxu0 0
    %913 = vmatpush1.bf16.msra.mxu0 0
    %914 = vmatprep.subr.bf16.mxu0 0
    %915 = vmatpush1.bf16.msra.mxu0 0
    %916 = vmatprep.subr.bf16.mxu0 0
    %917 = vmatpush1.bf16.msra.mxu0 0
    %918 = vmatprep.subr.bf16.mxu0 0
    %919 = vmatpush1.bf16.msra.mxu0 0
    %920 = vmatprep.mubr.bf16.mxu0 0
    %921 = vmatmul.mubr.bf16.gmra.mrb[0].mxu0 %v883
    %v922 = vpop.f32.mrb[0].mxu0
    %v923 = vadd.f32 0.0, %v922
    %v924 = vpop.f32.mrb[0].mxu0
    %v925 = vpop.f32.mrb[0].mxu0
    %v926 = vpop.f32.mrb[0].mxu0
    %927 = vdwg.mxu0
    %v928 = vpack.c.bf16 %v923, %v875
    %s929 = scalar_lea.vmem %s6, 8
    %v930 = vld [vmem:[%s929] sm:$0xf]
    %v932 = vsel %vm173, %v928, 0
    %v935 = vsel %vm297, %v930, 0
    %937 = vmatprep.subr.bf16.mxu0 0
    %938 = vmatpush1.bf16.msra.mxu0 %v935
    %939 = vmatprep.subr.bf16.mxu0 0
    %940 = vmatpush1.bf16.msra.mxu0 0
    %941 = vmatprep.subr.bf16.mxu0 0
    %942 = vmatpush1.bf16.msra.mxu0 0
    %943 = vmatprep.subr.bf16.mxu0 0
    %944 = vmatpush1.bf16.msra.mxu0 0
    %945 = vmatprep.subr.bf16.mxu0 0
    %946 = vmatpush1.bf16.msra.mxu0 0
    %947 = vmatprep.subr.bf16.mxu0 0
    %948 = vmatpush1.bf16.msra.mxu0 0
    %949 = vmatprep.subr.bf16.mxu0 0
    %950 = vmatpush1.bf16.msra.mxu0 0
    %951 = vmatprep.subr.bf16.mxu0 0
    %952 = vmatpush1.bf16.msra.mxu0 0
    %953 = vmatprep.subr.bf16.mxu0 0
    %954 = vmatpush1.bf16.msra.mxu0 0
    %955 = vmatprep.subr.bf16.mxu0 0
    %956 = vmatpush1.bf16.msra.mxu0 0
    %957 = vmatprep.subr.bf16.mxu0 0
    %958 = vmatpush1.bf16.msra.mxu0 0
    %959 = vmatprep.subr.bf16.mxu0 0
    %960 = vmatpush1.bf16.msra.mxu0 0
    %961 = vmatprep.subr.bf16.mxu0 0
    %962 = vmatpush1.bf16.msra.mxu0 0
    %963 = vmatprep.subr.bf16.mxu0 0
    %964 = vmatpush1.bf16.msra.mxu0 0
    %965 = vmatprep.subr.bf16.mxu0 0
    %966 = vmatpush1.bf16.msra.mxu0 0
    %967 = vmatprep.subr.bf16.mxu0 0
    %968 = vmatpush1.bf16.msra.mxu0 0
    %969 = vmatprep.mubr.bf16.mxu0 0
    %970 = vmatmul.mubr.bf16.gmra.mrb[0].mxu0 %v932
    %v971 = vpop.f32.mrb[0].mxu0
    %v972 = vadd.f32 0.0, %v971
    %v973 = vpop.f32.mrb[0].mxu0
    %v974 = vpop.f32.mrb[0].mxu0
    %v975 = vadd.f32 0.0, %v974
    %v976 = vpop.f32.mrb[0].mxu0
    %977 = vdwg.mxu0
    %v978 = vadd.f32 %v702, %v972
    %v979 = vadd.f32 %v705, %v975
    %980 = vrot.lane.b32.xlu0 %v169, 104
    %v981 = vpop.permute.xlu0 %980
    %982 = vrot.lane.b32.xlu0 %v169, 72
    %v983 = vpop.permute.xlu0 %982
    %v985 = vsel %vm173, %v981, 0
    %v988 = vsel %vm173, %v983, 0
    %990 = vmatprep.subr.bf16.mxu0 0
    %991 = vmatpush1.bf16.xpose.msra.mxu0 %v988
    %992 = vmatprep.subr.bf16.mxu0 0
    %993 = vmatpush1.bf16.xpose.msra.mxu0 0
    %994 = vmatprep.subr.bf16.mxu0 0
    %995 = vmatpush1.bf16.xpose.msra.mxu0 0
    %996 = vmatprep.subr.bf16.mxu0 0
    %997 = vmatpush1.bf16.xpose.msra.mxu0 0
    %998 = vmatprep.subr.bf16.mxu0 0
    %999 = vmatpush1.bf16.xpose.msra.mxu0 0
    %1000 = vmatprep.subr.bf16.mxu0 0
    %1001 = vmatpush1.bf16.xpose.msra.mxu0 0
    %1002 = vmatprep.subr.bf16.mxu0 0
    %1003 = vmatpush1.bf16.xpose.msra.mxu0 0
    %1004 = vmatprep.subr.bf16.mxu0 0
    %1005 = vmatpush1.bf16.xpose.msra.mxu0 0
    %1006 = vmatprep.subr.bf16.mxu0 0
    %1007 = vmatpush1.bf16.xpose.msra.mxu0 0
    %1008 = vmatprep.subr.bf16.mxu0 0
    %1009 = vmatpush1.bf16.xpose.msra.mxu0 0
    %1010 = vmatprep.subr.bf16.mxu0 0
    %1011 = vmatpush1.bf16.xpose.msra.mxu0 0
    %1012 = vmatprep.subr.bf16.mxu0 0
    %1013 = vmatpush1.bf16.xpose.msra.mxu0 0
    %1014 = vmatprep.subr.bf16.mxu0 0
    %1015 = vmatpush1.bf16.xpose.msra.mxu0 0
    %1016 = vmatprep.subr.bf16.mxu0 0
    %1017 = vmatpush1.bf16.xpose.msra.mxu0 0
    %1018 = vmatprep.subr.bf16.mxu0 0
    %1019 = vmatpush1.bf16.xpose.msra.mxu0 0
    %1020 = vmatprep.subr.bf16.mxu0 0
    %1021 = vmatpush1.bf16.xpose.msra.mxu0 0
    %1022 = vmatprep.mubr.bf16.mxu0 0
    %1023 = vmatmul.mubr.bf16.gmra.mrb[0].mxu0 %v985
    %v1024 = vpop.f32.mrb[0].mxu0
    %v1025 = vadd.f32 0.0, %v1024
    %v1026 = vpop.f32.mrb[0].mxu0
    %v1027 = vpop.f32.mrb[0].mxu0
    %v1028 = vpop.f32.mrb[0].mxu0
    %1029 = vdwg.mxu0
    %1030 = vrot.lane.b32.xlu0 %v170, 104
    %v1031 = vpop.permute.xlu0 %1030
    %1032 = vrot.lane.b32.xlu0 %v170, 72
    %v1033 = vpop.permute.xlu0 %1032
    %v1035 = vsel %vm173, %v1031, 0
    %v1038 = vsel %vm173, %v1033, 0
    %1040 = vmatprep.subr.bf16.mxu0 0
    %1041 = vmatpush1.bf16.xpose.msra.mxu0 %v1038
    %1042 = vmatprep.subr.bf16.mxu0 0
    %1043 = vmatpush1.bf16.xpose.msra.mxu0 0
    %1044 = vmatprep.subr.bf16.mxu0 0
    %1045 = vmatpush1.bf16.xpose.msra.mxu0 0
    %1046 = vmatprep.subr.bf16.mxu0 0
    %1047 = vmatpush1.bf16.xpose.msra.mxu0 0
    %1048 = vmatprep.subr.bf16.mxu0 0
    %1049 = vmatpush1.bf16.xpose.msra.mxu0 0
    %1050 = vmatprep.subr.bf16.mxu0 0
    %1051 = vmatpush1.bf16.xpose.msra.mxu0 0
    %1052 = vmatprep.subr.bf16.mxu0 0
    %1053 = vmatpush1.bf16.xpose.msra.mxu0 0
    %1054 = vmatprep.subr.bf16.mxu0 0
    %1055 = vmatpush1.bf16.xpose.msra.mxu0 0
    %1056 = vmatprep.subr.bf16.mxu0 0
    %1057 = vmatpush1.bf16.xpose.msra.mxu0 0
    %1058 = vmatprep.subr.bf16.mxu0 0
    %1059 = vmatpush1.bf16.xpose.msra.mxu0 0
    %1060 = vmatprep.subr.bf16.mxu0 0
    %1061 = vmatpush1.bf16.xpose.msra.mxu0 0
    %1062 = vmatprep.subr.bf16.mxu0 0
    %1063 = vmatpush1.bf16.xpose.msra.mxu0 0
    %1064 = vmatprep.subr.bf16.mxu0 0
    %1065 = vmatpush1.bf16.xpose.msra.mxu0 0
    %1066 = vmatprep.subr.bf16.mxu0 0
    %1067 = vmatpush1.bf16.xpose.msra.mxu0 0
    %1068 = vmatprep.subr.bf16.mxu0 0
    %1069 = vmatpush1.bf16.xpose.msra.mxu0 0
    %1070 = vmatprep.subr.bf16.mxu0 0
    %1071 = vmatpush1.bf16.xpose.msra.mxu0 0
    %1072 = vmatprep.mubr.bf16.mxu0 0
    %1073 = vmatmul.mubr.bf16.gmra.mrb[0].mxu0 %v1035
    %v1074 = vpop.f32.mrb[0].mxu0
    %v1075 = vadd.f32 0.0, %v1074
    %v1076 = vpop.f32.mrb[0].mxu0
    %v1077 = vpop.f32.mrb[0].mxu0
    %v1078 = vpop.f32.mrb[0].mxu0
    %1079 = vdwg.mxu0
    %v1080 = vsel %vm173, %v1025, -inf
    %1081 = vmax.xlane.f32.xlu0 %v1080
    %v1082 = vpop.xlane.xlu0 %1081
    %v1083 = vsel %vm173, %v1075, -inf
    %1084 = vmax.xlane.f32.xlu0 %v1083
    %v1085 = vpop.xlane.xlu0 %1084
    %v1086 = vsub.f32 %v1025, %v1082
    %v1087 = vsub.f32 %v1075, %v1085
    %v1088 = vmul.f32 %v1086, 1.442695
    %v1089 = vpow.pop %v1088
    %v1090 = vmul.f32 %v1087, 1.442695
    %v1091 = vpow.pop %v1090
    %v1092 = vsel %vm173, %v1089, 0.0
    %1093 = vadd.xlane.f32.xlu0 %v1092
    %v1094 = vpop.xlane.xlu0 %1093
    %v1095 = vsel %vm173, %v1091, 0.0
    %1096 = vadd.xlane.f32.xlu0 %v1095
    %v1097 = vpop.xlane.xlu0 %1096
    %v1098 = vrcp.pop %v1094
    %v1099 = vrcp.pop %v1097
    %v1100 = vmul.f32 %v1089, %v1098
    %v1101 = vmul.f32 %v1091, %v1099
    %v1102 = vpack.c.bf16 %v1100, %v1100
    %v1103 = vpack.c.bf16 %v1101, %v1101
    %1104 = vrot.lane.b32.xlu0 %v169, 40
    %v1105 = vpop.permute.xlu0 %1104
    %v1107 = vsel %vm173, %v1102, 0
    %v1110 = vsel %vm297, %v1105, 0
    %1112 = vmatprep.subr.bf16.mxu0 0
    %1113 = vmatpush1.bf16.msra.mxu0 %v1110
    %1114 = vmatprep.subr.bf16.mxu0 0
    %1115 = vmatpush1.bf16.msra.mxu0 0
    %1116 = vmatprep.subr.bf16.mxu0 0
    %1117 = vmatpush1.bf16.msra.mxu0 0
    %1118 = vmatprep.subr.bf16.mxu0 0
    %1119 = vmatpush1.bf16.msra.mxu0 0
    %1120 = vmatprep.subr.bf16.mxu0 0
    %1121 = vmatpush1.bf16.msra.mxu0 0
    %1122 = vmatprep.subr.bf16.mxu0 0
    %1123 = vmatpush1.bf16.msra.mxu0 0
    %1124 = vmatprep.subr.bf16.mxu0 0
    %1125 = vmatpush1.bf16.msra.mxu0 0
    %1126 = vmatprep.subr.bf16.mxu0 0
    %1127 = vmatpush1.bf16.msra.mxu0 0
    %1128 = vmatprep.subr.bf16.mxu0 0
    %1129 = vmatpush1.bf16.msra.mxu0 0
    %1130 = vmatprep.subr.bf16.mxu0 0
    %1131 = vmatpush1.bf16.msra.mxu0 0
    %1132 = vmatprep.subr.bf16.mxu0 0
    %1133 = vmatpush1.bf16.msra.mxu0 0
    %1134 = vmatprep.subr.bf16.mxu0 0
    %1135 = vmatpush1.bf16.msra.mxu0 0
    %1136 = vmatprep.subr.bf16.mxu0 0
    %1137 = vmatpush1.bf16.msra.mxu0 0
    %1138 = vmatprep.subr.bf16.mxu0 0
    %1139 = vmatpush1.bf16.msra.mxu0 0
    %1140 = vmatprep.subr.bf16.mxu0 0
    %1141 = vmatpush1.bf16.msra.mxu0 0
    %1142 = vmatprep.subr.bf16.mxu0 0
    %1143 = vmatpush1.bf16.msra.mxu0 0
    %1144 = vmatprep.mubr.bf16.mxu0 0
    %1145 = vmatmul.mubr.bf16.gmra.mrb[0].mxu0 %v1107
    %v1146 = vpop.f32.mrb[0].mxu0
    %v1147 = vadd.f32 0.0, %v1146
    %v1148 = vpop.f32.mrb[0].mxu0
    %v1149 = vpop.f32.mrb[0].mxu0
    %v1150 = vpop.f32.mrb[0].mxu0
    %1151 = vdwg.mxu0
    %1152 = vrot.lane.b32.xlu0 %v170, 40
    %v1153 = vpop.permute.xlu0 %1152
    %v1155 = vsel %vm173, %v1103, 0
    %v1158 = vsel %vm297, %v1153, 0
    %1160 = vmatprep.subr.bf16.mxu0 0
    %1161 = vmatpush1.bf16.msra.mxu0 %v1158
    %1162 = vmatprep.subr.bf16.mxu0 0
    %1163 = vmatpush1.bf16.msra.mxu0 0
    %1164 = vmatprep.subr.bf16.mxu0 0
    %1165 = vmatpush1.bf16.msra.mxu0 0
    %1166 = vmatprep.subr.bf16.mxu0 0
    %1167 = vmatpush1.bf16.msra.mxu0 0
    %1168 = vmatprep.subr.bf16.mxu0 0
    %1169 = vmatpush1.bf16.msra.mxu0 0
    %1170 = vmatprep.subr.bf16.mxu0 0
    %1171 = vmatpush1.bf16.msra.mxu0 0
    %1172 = vmatprep.subr.bf16.mxu0 0
    %1173 = vmatpush1.bf16.msra.mxu0 0
    %1174 = vmatprep.subr.bf16.mxu0 0
    %1175 = vmatpush1.bf16.msra.mxu0 0
    %1176 = vmatprep.subr.bf16.mxu0 0
    %1177 = vmatpush1.bf16.msra.mxu0 0
    %1178 = vmatprep.subr.bf16.mxu0 0
    %1179 = vmatpush1.bf16.msra.mxu0 0
    %1180 = vmatprep.subr.bf16.mxu0 0
    %1181 = vmatpush1.bf16.msra.mxu0 0
    %1182 = vmatprep.subr.bf16.mxu0 0
    %1183 = vmatpush1.bf16.msra.mxu0 0
    %1184 = vmatprep.subr.bf16.mxu0 0
    %1185 = vmatpush1.bf16.msra.mxu0 0
    %1186 = vmatprep.subr.bf16.mxu0 0
    %1187 = vmatpush1.bf16.msra.mxu0 0
    %1188 = vmatprep.subr.bf16.mxu0 0
    %1189 = vmatpush1.bf16.msra.mxu0 0
    %1190 = vmatprep.subr.bf16.mxu0 0
    %1191 = vmatpush1.bf16.msra.mxu0 0
    %1192 = vmatprep.mubr.bf16.mxu0 0
    %1193 = vmatmul.mubr.bf16.gmra.mrb[0].mxu0 %v1155
    %v1194 = vpop.f32.mrb[0].mxu0
    %v1195 = vadd.f32 0.0, %v1194
    %v1196 = vpop.f32.mrb[0].mxu0
    %v1197 = vpop.f32.mrb[0].mxu0
    %v1198 = vpop.f32.mrb[0].mxu0
    %1199 = vdwg.mxu0
    %v1200 = vpack.c.bf16 %v1195, %v1147
    %s1201 = scalar_lea.vmem %s6, 12
    %v1202 = vld [vmem:[%s1201] sm:$0xf]
    %v1204 = vsel %vm173, %v1200, 0
    %v1207 = vsel %vm297, %v1202, 0
    %1209 = vmatprep.subr.bf16.mxu0 0
    %1210 = vmatpush1.bf16.msra.mxu0 %v1207
    %1211 = vmatprep.subr.bf16.mxu0 0
    %1212 = vmatpush1.bf16.msra.mxu0 0
    %1213 = vmatprep.subr.bf16.mxu0 0
    %1214 = vmatpush1.bf16.msra.mxu0 0
    %1215 = vmatprep.subr.bf16.mxu0 0
    %1216 = vmatpush1.bf16.msra.mxu0 0
    %1217 = vmatprep.subr.bf16.mxu0 0
    %1218 = vmatpush1.bf16.msra.mxu0 0
    %1219 = vmatprep.subr.bf16.mxu0 0
    %1220 = vmatpush1.bf16.msra.mxu0 0
    %1221 = vmatprep.subr.bf16.mxu0 0
    %1222 = vmatpush1.bf16.msra.mxu0 0
    %1223 = vmatprep.subr.bf16.mxu0 0
    %1224 = vmatpush1.bf16.msra.mxu0 0
    %1225 = vmatprep.subr.bf16.mxu0 0
    %1226 = vmatpush1.bf16.msra.mxu0 0
    %1227 = vmatprep.subr.bf16.mxu0 0
    %1228 = vmatpush1.bf16.msra.mxu0 0
    %1229 = vmatprep.subr.bf16.mxu0 0
    %1230 = vmatpush1.bf16.msra.mxu0 0
    %1231 = vmatprep.subr.bf16.mxu0 0
    %1232 = vmatpush1.bf16.msra.mxu0 0
    %1233 = vmatprep.subr.bf16.mxu0 0
    %1234 = vmatpush1.bf16.msra.mxu0 0
    %1235 = vmatprep.subr.bf16.mxu0 0
    %1236 = vmatpush1.bf16.msra.mxu0 0
    %1237 = vmatprep.subr.bf16.mxu0 0
    %1238 = vmatpush1.bf16.msra.mxu0 0
    %1239 = vmatprep.subr.bf16.mxu0 0
    %1240 = vmatpush1.bf16.msra.mxu0 0
    %1241 = vmatprep.mubr.bf16.mxu0 0
    %1242 = vmatmul.mubr.bf16.gmra.mrb[0].mxu0 %v1204
    %v1243 = vpop.f32.mrb[0].mxu0
    %v1244 = vadd.f32 0.0, %v1243
    %v1245 = vpop.f32.mrb[0].mxu0
    %v1246 = vpop.f32.mrb[0].mxu0
    %v1247 = vadd.f32 0.0, %v1246
    %v1248 = vpop.f32.mrb[0].mxu0
    %1249 = vdwg.mxu0
    %v1250 = vadd.f32 %v978, %v1244
    %v1251 = vadd.f32 %v979, %v1247
    %v1252 = vadd.f32 %v49, %v1250
    %v1253 = vadd.f32 %v50, %v1251
    %v1254 = vld [vmem:[%s7] sm:$0x1]
    %v1256 = vlaneseq
    %v1257 = vshrl.u32 %v1256, 7
    %v1258 = vsub.s32 0, %v1257
    %v1259 = vrot.slane %v1254, %v1258
    %v1261 = vadd.f32 %v1252, %v1259
    %v1262 = vadd.f32 %v1253, %v1259
    %v1263 = vld [vmem:[%s8] sm:$0x1]
    %v1264 = vld [vmem:[%s9] sm:$0x1]
    %v1265 = vsel %vm53, %v1261, 0.0
    %1266 = vadd.xlane.f32.xlu0 %v1265
    %v1267 = vpop.xlane.xlu0 %1266
    %v1268 = vsel %vm53, %v1262, 0.0
    %1269 = vadd.xlane.f32.xlu0 %v1268
    %v1270 = vpop.xlane.xlu0 %1269
    %v1271 = vmul.f32 %v1267, %v60
    %v1272 = vmul.f32 %v1270, %v60
    %v1273 = vsub.f32 %v1261, %v1271
    %v1274 = vsub.f32 %v1262, %v1272
    %v1275 = vmul.f32 %v1273, %v1273
    %v1276 = vmul.f32 %v1274, %v1274
    %v1277 = vsel %vm53, %v1275, 0.0
    %1278 = vadd.xlane.f32.xlu0 %v1277
    %v1279 = vpop.xlane.xlu0 %1278
    %v1280 = vsel %vm53, %v1276, 0.0
    %1281 = vadd.xlane.f32.xlu0 %v1280
    %v1282 = vpop.xlane.xlu0 %1281
    %v1283 = vmul.f32 %v1279, %v60
    %v1284 = vmul.f32 %v1282, %v60
    %v1285 = vadd.f32 %v1283, 1e-05
    %v1286 = vadd.f32 %v1284, 1e-05
    %v1287 = vrsqrt.pop %v1285
    %v1288 = vrsqrt.pop %v1286
    %v1289 = vmul.f32 %v1273, %v1287
    %v1290 = vmul.f32 %v1274, %v1288
    %v1292 = vlaneseq
    %v1293 = vshrl.u32 %v1292, 7
    %v1294 = vsub.s32 0, %v1293
    %v1295 = vrot.slane %v1263, %v1294
    %v1297 = vmul.f32 %v1289, %v1295
    %v1298 = vmul.f32 %v1290, %v1295
    %v1300 = vlaneseq
    %v1301 = vshrl.u32 %v1300, 7
    %v1302 = vsub.s32 0, %v1301
    %v1303 = vrot.slane %v1264, %v1302
    %v1305 = vadd.f32 %v1297, %v1303
    %v1306 = vadd.f32 %v1298, %v1303
    %v1307 = vpack.c.bf16 %v1306, %v1305
    %v1308 = vld [vmem:[%s10] sm:$0xf]
    %v1309 = vld [vmem:[%s10 + $0x4] sm:$0xf]
    %v1310 = vld [vmem:[%s10 + $0x8] sm:$0xf]
    %v1311 = vld [vmem:[%s10 + $0xc] sm:$0xf]
    %v1312 = vld [vmem:[%s11] sm:$0x1]
    %v1314 = vlaneseq
    %v1315 = vshrl.u32 %v1314, 7
    %v1316 = vsub.s32 0, %v1315
    %v1317 = vrot.slane %v1312, %v1316
    %v1323 = vunpack.c.l.b16 %v1308
    %v1324 = vunpack.c.l.b16 %v1309
    %v1325 = vunpack.c.l.b16 %v1310
    %v1326 = vunpack.c.l.b16 %v1311
    %v1327 = vpack.c.b16 %v1324, %v1323
    %v1328 = vpack.c.b16 %v1326, %v1325
    %v1332 = vsel %vm53, %v1307, 0
    %1334 = vmatprep.subr.bf16.mxu0 0
    %1335 = vmatpush1.bf16.msra.mxu0 %v1327
    %1336 = vmatprep.subr.bf16.mxu0 0
    %1337 = vmatpush1.bf16.msra.mxu0 %v1328
    %1338 = vmatprep.subr.bf16.mxu0 0
    %1339 = vmatpush1.bf16.msra.mxu0 0
    %1340 = vmatprep.subr.bf16.mxu0 0
    %1341 = vmatpush1.bf16.msra.mxu0 0
    %1342 = vmatprep.subr.bf16.mxu0 0
    %1343 = vmatpush1.bf16.msra.mxu0 0
    %1344 = vmatprep.subr.bf16.mxu0 0
    %1345 = vmatpush1.bf16.msra.mxu0 0
    %1346 = vmatprep.subr.bf16.mxu0 0
    %1347 = vmatpush1.bf16.msra.mxu0 0
    %1348 = vmatprep.subr.bf16.mxu0 0
    %1349 = vmatpush1.bf16.msra.mxu0 0
    %1350 = vmatprep.subr.bf16.mxu0 0
    %1351 = vmatpush1.bf16.msra.mxu0 0
    %1352 = vmatprep.subr.bf16.mxu0 0
    %1353 = vmatpush1.bf16.msra.mxu0 0
    %1354 = vmatprep.subr.bf16.mxu0 0
    %1355 = vmatpush1.bf16.msra.mxu0 0
    %1356 = vmatprep.subr.bf16.mxu0 0
    %1357 = vmatpush1.bf16.msra.mxu0 0
    %1358 = vmatprep.subr.bf16.mxu0 0
    %1359 = vmatpush1.bf16.msra.mxu0 0
    %1360 = vmatprep.subr.bf16.mxu0 0
    %1361 = vmatpush1.bf16.msra.mxu0 0
    %1362 = vmatprep.subr.bf16.mxu0 0
    %1363 = vmatpush1.bf16.msra.mxu0 0
    %1364 = vmatprep.subr.bf16.mxu0 0
    %1365 = vmatpush1.bf16.msra.mxu0 0
    %1366 = vmatprep.mubr.bf16.mxu0 0
    %1367 = vmatmul.mubr.bf16.gmra.mrb[0].mxu0 %v1332
    %v1368 = vpop.f32.mrb[0].mxu0
    %v1369 = vadd.f32 %v1317, %v1368
    %v1370 = vpop.f32.mrb[0].mxu0
    %v1371 = vpop.f32.mrb[0].mxu0
    %v1372 = vadd.f32 %v1317, %v1371
    %v1373 = vpop.f32.mrb[0].mxu0
    %1374 = vdwg.mxu0
    %v1375 = vmul.f32 %v1369, 1.702
    %v1376 = vmul.f32 %v1372, 1.702
    %v1377 = vxor.u32 %v1375, 2147483648
    %v1378 = vxor.u32 %v1376, 2147483648
    %v1379 = vmul.f32 %v1377, 1.442695
    %v1380 = vpow.pop %v1379
    %v1381 = vmul.f32 %v1378, 1.442695
    %v1382 = vpow.pop %v1381
    %v1383 = vadd.f32 %v1380, 1.0
    %v1384 = vadd.f32 %v1382, 1.0
    %v1385 = vrcp.pop %v1383
    %v1386 = vmul.f32 1.0, %v1385
    %v1387 = vrcp.pop %v1384
    %v1388 = vmul.f32 1.0, %v1387
    %v1389 = vmul.f32 %v1369, %v1386
    %v1390 = vmul.f32 %v1372, %v1388
    %v1391 = vpack.c.bf16 %v1390, %v1389
    %v1392 = vld [vmem:[%s12] sm:$0xf]
    %v1393 = vld [vmem:[%s12 + $0x4] sm:$0xf]
    %v1394 = vld [vmem:[%s12 + $0x8] sm:$0xf]
    %v1395 = vld [vmem:[%s12 + $0xc] sm:$0xf]
    %v1396 = vld [vmem:[%s12 + $0x10] sm:$0xf]
    %v1397 = vld [vmem:[%s12 + $0x14] sm:$0xf]
    %v1398 = vld [vmem:[%s12 + $0x18] sm:$0xf]
    %v1399 = vld [vmem:[%s12 + $0x1c] sm:$0xf]
    %v1400 = vld [vmem:[%s12 + $0x20] sm:$0xf]
    %v1401 = vld [vmem:[%s12 + $0x24] sm:$0xf]
    %v1402 = vld [vmem:[%s12 + $0x28] sm:$0xf]
    %v1403 = vld [vmem:[%s12 + $0x2c] sm:$0xf]
    %v1404 = vld [vmem:[%s12 + $0x30] sm:$0xf]
    %v1405 = vld [vmem:[%s12 + $0x34] sm:$0xf]
    %v1406 = vld [vmem:[%s12 + $0x38] sm:$0xf]
    %v1407 = vld [vmem:[%s12 + $0x3c] sm:$0xf]
    %v1424 = vunpack.c.l.b16 %v1392
    %v1425 = vunpack.c.l.b16 %v1393
    %v1426 = vunpack.c.l.b16 %v1394
    %v1427 = vunpack.c.l.b16 %v1395
    %v1428 = vunpack.c.l.b16 %v1396
    %v1429 = vunpack.c.l.b16 %v1397
    %v1430 = vunpack.c.l.b16 %v1398
    %v1431 = vunpack.c.l.b16 %v1399
    %v1432 = vunpack.c.l.b16 %v1400
    %v1433 = vunpack.c.l.b16 %v1401
    %v1434 = vunpack.c.l.b16 %v1402
    %v1435 = vunpack.c.l.b16 %v1403
    %v1436 = vunpack.c.l.b16 %v1404
    %v1437 = vunpack.c.l.b16 %v1405
    %v1438 = vunpack.c.l.b16 %v1406
    %v1439 = vunpack.c.l.b16 %v1407
    %v1440 = vpack.c.b16 %v1425, %v1424
    %v1441 = vpack.c.b16 %v1427, %v1426
    %v1442 = vpack.c.b16 %v1429, %v1428
    %v1443 = vpack.c.b16 %v1431, %v1430
    %v1444 = vpack.c.b16 %v1433, %v1432
    %v1445 = vpack.c.b16 %v1435, %v1434
    %v1446 = vpack.c.b16 %v1437, %v1436
    %v1447 = vpack.c.b16 %v1439, %v1438
    %1456 = vmatprep.subr.bf16.mxu0 0
    %1457 = vmatpush1.bf16.msra.mxu0 %v1440
    %1458 = vmatprep.subr.bf16.mxu0 0
    %1459 = vmatpush1.bf16.msra.mxu0 %v1441
    %1460 = vmatprep.subr.bf16.mxu0 0
    %1461 = vmatpush1.bf16.msra.mxu0 %v1442
    %1462 = vmatprep.subr.bf16.mxu0 0
    %1463 = vmatpush1.bf16.msra.mxu0 %v1443
    %1464 = vmatprep.subr.bf16.mxu0 0
    %1465 = vmatpush1.bf16.msra.mxu0 %v1444
    %1466 = vmatprep.subr.bf16.mxu0 0
    %1467 = vmatpush1.bf16.msra.mxu0 %v1445
    %1468 = vmatprep.subr.bf16.mxu0 0
    %1469 = vmatpush1.bf16.msra.mxu0 %v1446
    %1470 = vmatprep.subr.bf16.mxu0 0
    %1471 = vmatpush1.bf16.msra.mxu0 %v1447
    %1472 = vmatprep.subr.bf16.mxu0 0
    %1473 = vmatpush1.bf16.msra.mxu0 0
    %1474 = vmatprep.subr.bf16.mxu0 0
    %1475 = vmatpush1.bf16.msra.mxu0 0
    %1476 = vmatprep.subr.bf16.mxu0 0
    %1477 = vmatpush1.bf16.msra.mxu0 0
    %1478 = vmatprep.subr.bf16.mxu0 0
    %1479 = vmatpush1.bf16.msra.mxu0 0
    %1480 = vmatprep.subr.bf16.mxu0 0
    %1481 = vmatpush1.bf16.msra.mxu0 0
    %1482 = vmatprep.subr.bf16.mxu0 0
    %1483 = vmatpush1.bf16.msra.mxu0 0
    %1484 = vmatprep.subr.bf16.mxu0 0
    %1485 = vmatpush1.bf16.msra.mxu0 0
    %1486 = vmatprep.subr.bf16.mxu0 0
    %1487 = vmatpush1.bf16.msra.mxu0 0
    %1488 = vmatprep.mubr.bf16.mxu0 0
    %1489 = vmatmul.mubr.bf16.gmra.mrb[0].mxu0 %v1391
    %v1490 = vpop.f32.mrb[0].mxu0
    %v1491 = vadd.f32 0.0, %v1490
    %v1492 = vpop.f32.mrb[0].mxu0
    %v1493 = vpop.f32.mrb[0].mxu0
    %v1494 = vadd.f32 0.0, %v1493
    %v1495 = vpop.f32.mrb[0].mxu0
    %1496 = vdwg.mxu0
    %v1497 = vadd.f32 %v1261, %v1491
    %v1498 = vadd.f32 %v1262, %v1494
    %v1499 = vld [vmem:[%s13] sm:$0x1]
    %v1501 = vlaneseq
    %v1502 = vshrl.u32 %v1501, 7
    %v1503 = vsub.s32 0, %v1502
    %v1504 = vrot.slane %v1499, %v1503
    %v1506 = vadd.f32 %v1497, %v1504
    %v1507 = vadd.f32 %v1498, %v1504
    %1508 = vst.msk [vmem:[#allocation2] sm:$0xff] %vm53, %v1506
    %1509 = vst.msk [vmem:[#allocation2 + $0x8] sm:$0xff] %vm53, %v1507
    // Predicated region
    $region58: #{tpu_custom_call.1} parent=1 // pred_check
      _
    $region59: #{tpu_custom_call.1} parent=1 // pred_check_branch
      %1511 = sbr.rel (0) target = $region61
    $region60: #{tpu_custom_call.1} parent=1 // pred_region
      %s1513 = ssub.s32 256, 256
      %1514 = vsyncadd [#allocation3], %s1513
      %s1515 = sshll.u32 [#allocation2], 4
      %s1516 = int_to_ptr.vmem [resolvable:$true] %s1515
      %1521 = dma.vmem_to_hbm [thread:$0]  %s1516, 256, %s14, [#allocation3], 128, 128, 8
    $region61: #{tpu_custom_call.1} parent=1 // pred_fallthru
      _
    // Predicated region
    $region62: #{tpu_custom_call.1} parent=1 // pred_check
      _
    $region63: #{tpu_custom_call.1} parent=1 // pred_check_branch
      %1523 = sbr.rel (0) target = $region65
    $region64: #{tpu_custom_call.1} parent=1 // pred_region
      %1524 = dma.done [#allocation3], 256
    $region65: #{tpu_custom_call.1} parent=1 // pred_fallthru
      _
    %1525 = vsyncpa [#allocation3], 1

</llo_original>
